<compile_context>
chip_gen: v7x
topology: tpu7x:2x2x1
jax: 0.10.0
libtpu: 0.0.40
codegen_flags: <defaults>
</compile_context>

<pallas_src>
import functools

import jax
import jax.numpy as jnp
from jax.experimental import pallas as pl
from jax.experimental.pallas import tpu as pltpu


KH = KW = 2
KK = KH * KW


# --------------------------------------------------------------------------------------
# helpers
# --------------------------------------------------------------------------------------
def _round_up(x, m):
    return (x + m - 1) // m * m


def _sublane(dtype):
    # native sublane packing: 8 rows for 4-byte, 16 for 2-byte, 32 for 1-byte dtypes
    return max(8, 32 // jnp.dtype(dtype).itemsize)


def _tile_bytes(rows, cols, dtype):
    """VMEM footprint of a (rows, cols) tile including lane/sublane padding."""
    it = jnp.dtype(dtype).itemsize
    return _round_up(max(int(rows), 1), _sublane(dtype)) * _round_up(max(int(cols), 1), 128) * it


def _vmem_budget_bytes():
    """Usable VMEM budget derived from the actual chip (64 MiB v7x, 128 MiB v5e/v6e)."""
    cap = 64 * 1024 * 1024          # conservative default if the query is unavailable
    try:
        info = pltpu.get_tpu_info()
        cap = int(getattr(info, "vmem_capacity_bytes", cap))
    except Exception:
        pass
    return max(32 * 1024 * 1024, cap - 20 * 1024 * 1024)   # headroom for Mosaic scratch


def _plan_flat(M, C1, NOUT, in_dt, out_dt, tm_target, budget):
    """Tile sizes (tm, tn) for the flat (M, C1) @ (C1, NOUT) fallback kernel."""
    gran = _sublane(in_dt)
    tm = min(_round_up(tm_target, gran), _round_up(M, gran))
    # v7x megacore: keep at least 2 steps on the parallel M axis when possible.
    tm = min(tm, max(gran, _round_up((M + 1) // 2, gran)))
    tn = NOUT

    def usage(tm_, tn_):
        gj = NOUT // tn_
        x_t = 2 * _tile_bytes(tm_, C1, in_dt)                       # double-buffered x tile
        w_t = (2 if gj > 1 else 1) * _tile_bytes(C1, tn_, in_dt)    # resident when gj == 1
        w_t += (2 if gj > 1 else 1) * _tile_bytes(1, tn_, jnp.float32)
        o_t = 2 * _tile_bytes(tm_, tn_, out_dt)                     # double-buffered out tile
        return x_t, w_t, o_t

    def can_halve_tn(tn_):
        return tn_ > 128 and (tn_ // 2) % 128 == 0 and NOUT % (tn_ // 2) == 0

    while True:
        x_t, w_t, o_t = usage(tm, tn)
        if x_t + w_t + o_t <= budget:
            break
        if w_t >= max(x_t, o_t) and can_halve_tn(tn):
            tn //= 2                      # weight block dominates -> split output channels
        elif tm > gran:
            tm = max(gran, _round_up(tm // 2, gran))
        elif can_halve_tn(tn):
            tn //= 2
        else:
            break
    return tm, tn


def _plan_fused(NH, W, C1, C2, in_dt, out_dt, tm_target, budget):
    """Largest t_nh dividing N*H (no row padding -> pure-view epilogue) that fits VMEM."""
    D = KW * C2
    t_nh_max = max(1, tm_target // max(W, 1))
    for t_nh in range(min(NH, t_nh_max), 0, -1):
        if NH % t_nh:
            continue
        t_m = t_nh * W
        x_t = 2 * _tile_bytes(t_m, C1, in_dt)                 # double-buffered x tile
        w_t = KH * _tile_bytes(C1, D, in_dt)                  # full weight, resident
        s_t = _tile_bytes(1, D, jnp.float32)
        o_t = 2 * t_nh * KH * _tile_bytes(W, D, out_dt)       # double-buffered out block
        if x_t + w_t + s_t + o_t <= budget:
            return t_nh
    return None


# --------------------------------------------------------------------------------------
# kernels
# --------------------------------------------------------------------------------------
def _silu(y, exact):
    if exact:
        return y * jax.nn.sigmoid(y)
    # exp and the approximate reciprocal both run on the EUP -> no VPU divide sequence.
    return y * pl.reciprocal(1.0 + jnp.exp(-y), approx=True)


def _flat_kernel(x_ref, w_ref, shift_ref, o_ref, *, exact_silu):
    # x_ref: (tm, C1); w_ref: (C1, tn) BN-scale folded; shift_ref: (1, tn); o_ref: (tm, tn)
    y = jnp.dot(x_ref[...], w_ref[...], preferred_element_type=jnp.float32)
    y = y + shift_ref[...]
    o_ref[...] = _silu(y, exact_silu).astype(o_ref.dtype)


def _fused_kernel(x_ref, w_ref, shift_ref, o_ref, *, exact_silu):
    # x_ref: (t_nh*W, C1); w_ref: (KH, C1, KW*C2) resident; shift_ref: (1, KW*C2)
    # o_ref: (t_nh, KH, W, KW*C2) -- this layout reshapes to NHWC as a pure view.
    t_nh, kh_dim, w_dim, d_dim = o_ref.shape
    x = x_ref[...]
    shift = shift_ref[...]
    for kh in range(kh_dim):                               # static, unrolled (KH == 2)
        y = jnp.dot(x, w_ref[kh], preferred_element_type=jnp.float32)
        y = _silu(y + shift, exact_silu)
        o_ref[:, kh, :, :] = y.reshape(t_nh, w_dim, d_dim).astype(o_ref.dtype)


# --------------------------------------------------------------------------------------
# forward core (NHWC in, NHWC or NCHW out)
# --------------------------------------------------------------------------------------
def _forward_nhwc_core(x_nhwc, w, gamma, beta, running_mean, running_var, eps,
                       compute_dtype, out_dtype, tm_target, output_format):
    N, H, W, C1 = x_nhwc.shape
    wc1, C2, kh_, kw_ = w.shape
    assert wc1 == C1 and (kh_, kw_) == (KH, KW), "only k=2, s=2, p=0 is supported"
    in_dt = jnp.dtype(compute_dtype)
    out_dt = jnp.dtype(out_dtype) if out_dtype is not None else in_dt
    exact_silu = out_dt == jnp.dtype(jnp.float32)
    budget = _vmem_budget_bytes()
    in_b, out_b = in_dt.itemsize, out_dt.itemsize

    # Fused inference BatchNorm affine; per-channel scale folded into the weight.
    scale_c = (gamma / jnp.sqrt(running_var + eps)).astype(jnp.float32)
    shift_c = (beta - running_mean * scale_c).astype(jnp.float32)

    NH, M = N * H, N * H * W
    x_flat = x_nhwc.reshape(M, C1).astype(in_dt)           # pure view (+ cast if needed)

    # ---- fast path: fused output layout (NH, KH, W, KW*C2), no un-interleave pass -----
    t_nh = _plan_fused(NH, W, C1, C2, in_dt, out_dt, tm_target, budget) if W % 8 == 0 else None
    if t_nh is not None and t_nh * W >= 32:
        D = KW * C2
        w_f = jnp.transpose(w.astype(jnp.float32), (2, 0, 3, 1)) * scale_c  # (KH,C1,KW,C2)
        w_f = w_f.reshape(KH, C1, D).astype(in_dt)
        shift_f = jnp.tile(shift_c, KW).reshape(1, D)
        t_m = t_nh * W
        cost = pl.CostEstimate(
            flops=2 * M * C1 * KK * C2,
            transcendentals=M * KK * C2,
            bytes_accessed=(M * C1 * in_b + KH * C1 * D * in_b + D * 4
                            + M * KK * C2 * out_b))
        y = pl.pallas_call(
            functools.partial(_fused_kernel, exact_silu=exact_silu),
            out_shape=jax.ShapeDtypeStruct((NH, KH, W, D), out_dt),
            grid_spec=pltpu.PrefetchScalarGridSpec(
                num_scalar_prefetch=0,
                grid=(NH // t_nh,),
                in_specs=[
                    pl.BlockSpec((t_m, C1), lambda i: (i, 0)),
                    pl.BlockSpec((KH, C1, D), lambda i: (0, 0, 0)),   # resident, DMA'd once
                    pl.BlockSpec((1, D), lambda i: (0, 0)),
                ],
                out_specs=pl.BlockSpec((t_nh, KH, W, D), lambda i: (i, 0, 0, 0)),
            ),
            compiler_params=pltpu.CompilerParams(
                dimension_semantics=("parallel",),
                vmem_limit_bytes=budget),
            cost_estimate=cost,
        )(x_flat, w_f, shift_f)
        y = y.reshape(N, KH * H, KW * W, C2)        # pure view -> NHWC, no extra HBM pass
        if output_format == "NCHW":
            y = jnp.transpose(y, (0, 3, 1, 2))      # only paid when PyTorch layout is needed
        return y

    # ---- fallback: flat interleaved-column kernel + ONE fused un-interleave pass ------
    C2p = _round_up(C2, 32)                         # 4*C2p multiple of 128 -> lane-dense vst
    NOUT = KK * C2p
    tm, tn = _plan_flat(M, C1, NOUT, in_dt, out_dt, tm_target, budget)
    Mp = _round_up(M, tm)
    if Mp != M:
        x_flat = jnp.pad(x_flat, ((0, Mp - M), (0, 0)))
    w_a = jnp.transpose(w.astype(jnp.float32), (0, 2, 3, 1)) * scale_c      # (C1,KH,KW,C2)
    shift_a = shift_c
    if C2p != C2:
        w_a = jnp.pad(w_a, ((0, 0), (0, 0), (0, 0), (0, C2p - C2)))
        shift_a = jnp.pad(shift_a, (0, C2p - C2))
    w_a = w_a.reshape(C1, NOUT).astype(in_dt)
    shift_a = jnp.tile(shift_a, KK).reshape(1, NOUT)
    cost = pl.CostEstimate(
        flops=2 * Mp * C1 * NOUT,
        transcendentals=Mp * NOUT,
        bytes_accessed=Mp * C1 * in_b + C1 * NOUT * in_b + NOUT * 4 + Mp * NOUT * out_b)
    y_flat = pl.pallas_call(
        functools.partial(_flat_kernel, exact_silu=exact_silu),
        out_shape=jax.ShapeDtypeStruct((Mp, NOUT), out_dt),
        grid_spec=pltpu.PrefetchScalarGridSpec(
            num_scalar_prefetch=0,
            grid=(Mp // tm, NOUT // tn),
            in_specs=[
                pl.BlockSpec((tm, C1), lambda i, j: (i, 0)),
                # weight/shift blocks are i-invariant -> kept resident along the M axis
                pl.BlockSpec((C1, tn), lambda i, j: (0, j)),
                pl.BlockSpec((1, tn), lambda i, j: (0, j)),
            ],
            out_specs=pl.BlockSpec((tm, tn), lambda i, j: (i, j)),
        ),
        compiler_params=pltpu.CompilerParams(
            dimension_semantics=("parallel", "parallel"),
            vmem_limit_bytes=budget),
        cost_estimate=cost,
    )(x_flat, w_a, shift_a)
    y6 = y_flat[:M].reshape(N, H, W, KH, KW, C2p)[..., :C2]
    if output_format == "NHWC":
        return jnp.transpose(y6, (0, 1, 3, 2, 4, 5)).reshape(N, KH * H, KW * W, C2)
    return jnp.transpose(y6, (0, 5, 1, 3, 2, 4)).reshape(N, C2, KH * H, KW * W)


# --------------------------------------------------------------------------------------
# public entry points
# --------------------------------------------------------------------------------------
def conv_transpose_bn_silu(x_nchw, w, gamma, beta, running_mean, running_var, eps=1e-5, *,
                           compute_dtype=jnp.bfloat16, out_dtype=None, tm=1024):
    """PyTorch-parity entry point: NCHW in, NCHW out (pays one layout transpose each way).
    x_nchw: (N, C1, H, W); w: (C1, C2, 2, 2) (PyTorch ConvTranspose2d layout).
    Returns (N, C2, 2H, 2W)."""
    x_nhwc = jnp.transpose(x_nchw.astype(jnp.dtype(compute_dtype)), (0, 2, 3, 1))
    return _forward_nhwc_core(x_nhwc, w, gamma, beta, running_mean, running_var, eps,
                              compute_dtype, out_dtype, tm, "NCHW")


def conv_transpose_bn_silu_nhwc(x_nhwc, w, gamma, beta, running_mean, running_var, eps=1e-5, *,
                                compute_dtype=jnp.bfloat16, out_dtype=None, tm=1024):
    """Fast path: NHWC in, NHWC out — no layout transposes, no un-interleave HBM pass
    (when W % 8 == 0)."""
    return _forward_nhwc_core(x_nhwc, w, gamma, beta, running_mean, running_var, eps,
                              compute_dtype, out_dtype, tm, "NHWC")


# --------------------------------------------------------------------------------------
# reference + self-test
# --------------------------------------------------------------------------------------
def _reference(x, w, gamma, beta, mean, var, eps=1e-5):
    """Pure-JAX reference of ConvTranspose2d(k=2,s=2,p=0,bias=False)+BN(eval)+SiLU."""
    N, C1, H, W = x.shape
    _, C2, kh, kw = w.shape
    y = jnp.einsum('nchw,cokl->nohkwl', x, w).reshape(N, C2, H * kh, W * kw)
    scale = (gamma / jnp.sqrt(var + eps)).reshape(1, C2, 1, 1)
    shift = (beta - mean * gamma / jnp.sqrt(var + eps)).reshape(1, C2, 1, 1)
    y = y * scale + shift
    return y * jax.nn.sigmoid(y)


if __name__ == "__main__":
    key = jax.random.PRNGKey(0)
    k_x, k_w, k_g, k_b, k_m, k_v, k_x2 = jax.random.split(key, 7)

    # Small shapes consistent with the module: N=2, C1=4, C2=8, H=W=16.
    N, C1, C2, H, W = 2, 4, 8, 16, 16
    x = jax.random.normal(k_x, (N, C1, H, W), dtype=jnp.float32)
    w = jax.random.normal(k_w, (C1, C2, 2, 2), dtype=jnp.float32) * 0.1
    gamma = 1.0 + 0.1 * jax.random.normal(k_g, (C2,), dtype=jnp.float32)
    beta = 0.1 * jax.random.normal(k_b, (C2,), dtype=jnp.float32)
    mean = 0.1 * jax.random.normal(k_m, (C2,), dtype=jnp.float32)
    var = jnp.abs(1.0 + 0.1 * jax.random.normal(k_v, (C2,), dtype=jnp.float32))

    ref = _reference(x, w, gamma, beta, mean, var)

    # 1) default bf16 path, fused-layout kernel (W % 8 == 0), NCHW parity wrapper
    f_bf16 = jax.jit(lambda *a: conv_transpose_bn_silu(*a))
    out = jax.block_until_ready(f_bf16(x, w, gamma, beta, mean, var))
    assert out.shape == (N, C2, 2 * H, 2 * W), out.shape
    assert out.dtype == jnp.bfloat16, out.dtype
    err = float(jnp.abs(out.astype(jnp.float32) - ref).max())
    assert jnp.allclose(out.astype(jnp.float32), ref, atol=5e-2, rtol=5e-2), err

    # 2) opt-in f32 parity path (exact SiLU), fused-layout kernel
    f_f32 = jax.jit(lambda *a: conv_transpose_bn_silu(*a, compute_dtype=jnp.float32))
    out32 = jax.block_until_ready(f_f32(x, w, gamma, beta, mean, var))
    assert jnp.allclose(out32, ref, atol=1e-5, rtol=1e-5), float(jnp.abs(out32 - ref).max())

    # 3) NHWC fast entry point (no layout transposes at all)
    x_nhwc = jnp.transpose(x, (0, 2, 3, 1))
    f_nhwc = jax.jit(lambda *a: conv_transpose_bn_silu_nhwc(*a, compute_dtype=jnp.float32))
    out_nhwc = jax.block_until_ready(f_nhwc(x_nhwc, w, gamma, beta, mean, var))
    assert out_nhwc.shape == (N, 2 * H, 2 * W, C2), out_nhwc.shape
    ref_nhwc = jnp.transpose(ref, (0, 2, 3, 1))
    assert jnp.allclose(out_nhwc, ref_nhwc, atol=1e-5, rtol=1e-5)

    # 4) odd spatial size (W % 8 != 0) exercises the flat fallback kernel + M padding
    N2, H2, W2 = 3, 10, 14
    x2 = jax.random.normal(k_x2, (N2, C1, H2, W2), dtype=jnp.float32)
    ref2 = _reference(x2, w, gamma, beta, mean, var)
    out2 = jax.block_until_ready(f_bf16(x2, w, gamma, beta, mean, var))
    assert out2.shape == (N2, C2, 2 * H2, 2 * W2), out2.shape
    err2 = float(jnp.abs(out2.astype(jnp.float32) - ref2).max())
    assert jnp.allclose(out2.astype(jnp.float32), ref2, atol=5e-2, rtol=5e-2), err2

    print("KERNEL_OK")
</pallas_src>

<mosaic_0001>
module attributes {stable_mosaic.version = 11 : i64} {
  func.func @_fused_kernel(%arg0: i32, %arg1: memref<512x4xbf16, #tpu.memory_space<vmem>>, %arg2: memref<2x4x16xbf16, #tpu.memory_space<vmem>>, %arg3: memref<1x16xf32, #tpu.memory_space<vmem>>, %arg4: memref<32x2x16x16xbf16, #tpu.memory_space<vmem>>) attributes {dimension_semantics = [#tpu.dimension_semantics<parallel>], iteration_bounds = array<i64: 1>, scalar_prefetch = 0 : i64, scratch_operands = 0 : i64, tpu.core_type = #tpu.core_type<tc>, window_params = [{transform_indices = @transform_0, window_bounds = array<i64: 512, 4>}, {pipeline_mode = #tpu.pipeline_mode<synchronous>, transform_indices = @transform_1, window_bounds = array<i64: 2, 4, 16>}, {pipeline_mode = #tpu.pipeline_mode<synchronous>, transform_indices = @transform_2, window_bounds = array<i64: 1, 16>}, {transform_indices = @transform_3, window_bounds = array<i64: 32, 2, 16, 16>}]} {
    %c0 = arith.constant 0 : index
    %c0_0 = arith.constant 0 : index
    %0 = vector.load %arg1[%c0, %c0_0] : memref<512x4xbf16, #tpu.memory_space<vmem>>, vector<512x4xbf16>
    %c0_1 = arith.constant 0 : index
    %c0_2 = arith.constant 0 : index
    %1 = vector.load %arg3[%c0_1, %c0_2] : memref<1x16xf32, #tpu.memory_space<vmem>>, vector<1x16xf32>
    %c0_3 = arith.constant 0 : index
    %c0_4 = arith.constant 0 : index
    %c0_5 = arith.constant 0 : index
    %2 = vector.load %arg2[%c0_3, %c0_4, %c0_5] : memref<2x4x16xbf16, #tpu.memory_space<vmem>>, vector<1x4x16xbf16>
    %3 = vector.shape_cast %2 : vector<1x4x16xbf16> to vector<4x16xbf16>
    %cst = arith.constant dense<0.000000e+00> : vector<512x16xf32>
    %4 = tpu.matmul %0, %3, %cst {dimension_numbers = #tpu.dot_dimension_numbers<[1], [0], [0], [1], [0, 0, 1, 1], [], []>} : vector<512x4xbf16>, vector<4x16xbf16>, vector<512x16xf32> -> vector<512x16xf32>
    %5 = vector.broadcast %1 : vector<1x16xf32> to vector<512x16xf32>
    %6 = arith.addf %4, %5 : vector<512x16xf32>
    %cst_6 = arith.constant 0.000000e+00 : f32
    %7 = vector.broadcast %cst_6 : f32 to vector<512x16xf32>
    %8 = arith.subf %7, %6 : vector<512x16xf32>
    %9 = math.exp %8 : vector<512x16xf32>
    %cst_7 = arith.constant 1.000000e+00 : f32
    %10 = vector.broadcast %cst_7 : f32 to vector<512x16xf32>
    %11 = arith.addf %10, %9 : vector<512x16xf32>
    %12 = tpu.reciprocal %11 {approx = true} : vector<512x16xf32> -> vector<512x16xf32>
    %13 = arith.mulf %6, %12 : vector<512x16xf32>
    %14 = vector.shape_cast %13 : vector<512x16xf32> to vector<32x16x16xf32>
    %15 = arith.truncf %14 : vector<32x16x16xf32> to vector<32x16x16xbf16>
    %c0_8 = arith.constant 0 : index
    %c0_9 = arith.constant 0 : index
    %c0_10 = arith.constant 0 : index
    %c0_11 = arith.constant 0 : index
    %16 = vector.load %arg4[%c0_8, %c0_9, %c0_10, %c0_11] : memref<32x2x16x16xbf16, #tpu.memory_space<vmem>>, vector<32x1x16x16xbf16>
    %17 = vector.shape_cast %16 : vector<32x1x16x16xbf16> to vector<32x16x16xbf16>
    %18 = vector.shape_cast %15 : vector<32x16x16xbf16> to vector<32x1x16x16xbf16>
    tpu.vector_store %arg4[%c0_8, %c0_9, %c0_10, %c0_11], %18 {strides = array<i32>} : memref<32x2x16x16xbf16, #tpu.memory_space<vmem>>, vector<32x1x16x16xbf16>,
    %c1 = arith.constant 1 : index
    %c0_12 = arith.constant 0 : index
    %c0_13 = arith.constant 0 : index
    %19 = vector.load %arg2[%c1, %c0_12, %c0_13] : memref<2x4x16xbf16, #tpu.memory_space<vmem>>, vector<1x4x16xbf16>
    %20 = vector.shape_cast %19 : vector<1x4x16xbf16> to vector<4x16xbf16>
    %cst_14 = arith.constant dense<0.000000e+00> : vector<512x16xf32>
    %21 = tpu.matmul %0, %20, %cst_14 {dimension_numbers = #tpu.dot_dimension_numbers<[1], [0], [0], [1], [0, 0, 1, 1], [], []>} : vector<512x4xbf16>, vector<4x16xbf16>, vector<512x16xf32> -> vector<512x16xf32>
    %22 = vector.broadcast %1 : vector<1x16xf32> to vector<512x16xf32>
    %23 = arith.addf %21, %22 : vector<512x16xf32>
    %cst_15 = arith.constant 0.000000e+00 : f32
    %24 = vector.broadcast %cst_15 : f32 to vector<512x16xf32>
    %25 = arith.subf %24, %23 : vector<512x16xf32>
    %26 = math.exp %25 : vector<512x16xf32>
    %cst_16 = arith.constant 1.000000e+00 : f32
    %27 = vector.broadcast %cst_16 : f32 to vector<512x16xf32>
    %28 = arith.addf %27, %26 : vector<512x16xf32>
    %29 = tpu.reciprocal %28 {approx = true} : vector<512x16xf32> -> vector<512x16xf32>
    %30 = arith.mulf %23, %29 : vector<512x16xf32>
    %31 = vector.shape_cast %30 : vector<512x16xf32> to vector<32x16x16xf32>
    %32 = arith.truncf %31 : vector<32x16x16xf32> to vector<32x16x16xbf16>
    %c0_17 = arith.constant 0 : index
    %c1_18 = arith.constant 1 : index
    %c0_19 = arith.constant 0 : index
    %c0_20 = arith.constant 0 : index
    %33 = vector.load %arg4[%c0_17, %c1_18, %c0_19, %c0_20] : memref<32x2x16x16xbf16, #tpu.memory_space<vmem>>, vector<32x1x16x16xbf16>
    %34 = vector.shape_cast %33 : vector<32x1x16x16xbf16> to vector<32x16x16xbf16>
    %35 = vector.shape_cast %32 : vector<32x16x16xbf16> to vector<32x1x16x16xbf16>
    tpu.vector_store %arg4[%c0_17, %c1_18, %c0_19, %c0_20], %35 {strides = array<i32>} : memref<32x2x16x16xbf16, #tpu.memory_space<vmem>>, vector<32x1x16x16xbf16>,
    return
  }
  func.func @transform_0(%arg0: i32) -> (i32, i32) {
    %c0_i32 = arith.constant 0 : i32
    %c0_i32_0 = arith.constant 0 : i32
    return %arg0, %c0_i32 : i32, i32
  }
  func.func @transform_1(%arg0: i32) -> (i32, i32, i32) {
    %c0_i32 = arith.constant 0 : i32
    %c0_i32_0 = arith.constant 0 : i32
    %c0_i32_1 = arith.constant 0 : i32
    %c0_i32_2 = arith.constant 0 : i32
    return %c0_i32, %c0_i32_0, %c0_i32_1 : i32, i32, i32
  }
  func.func @transform_2(%arg0: i32) -> (i32, i32) {
    %c0_i32 = arith.constant 0 : i32
    %c0_i32_0 = arith.constant 0 : i32
    %c0_i32_1 = arith.constant 0 : i32
    return %c0_i32, %c0_i32_0 : i32, i32
  }
  func.func @transform_3(%arg0: i32) -> (i32, i32, i32, i32) {
    %c0_i32 = arith.constant 0 : i32
    %c0_i32_0 = arith.constant 0 : i32
    %c0_i32_1 = arith.constant 0 : i32
    %c0_i32_2 = arith.constant 0 : i32
    return %arg0, %c0_i32, %c0_i32_0, %c0_i32_1 : i32, i32, i32, i32
  }
}

</mosaic_0001>

<llo_original>
// kernel: tile.8
$region0: #{tile.8}
  #allocation0 [shape = 's32[1]{0}', space=sflag, size = 0x4, scoped, tag = 'scoped memory for tile.8']
  %s0 = inlined_call_operand.vmem [shape: f32[8], index: 0, kind: input, shape index: {}]
  %s1 = inlined_call_operand.vmem [shape: f32[2,8], index: 1, kind: output, shape index: {}]
  // Predicated region
  $region2: #{tile.8} parent=0 // pred_check
    _
  $region3: #{tile.8} parent=0 // pred_check_branch
    %3 = sbr.rel (0) target = $region5
  $region4: #{tile.8} parent=0 // pred_region
    _
  $region5: #{tile.8} parent=0 // pred_fallthru
    _
  %v4 = vld [vmem:[%s0] ss:$0 sm:$0xff]
  %5 = vst [vmem:[%s1] sm:$0x3] %v4

// kernel: tile.9
$region0: #{tile.9}
  %s0 = inlined_call_operand.vmem [shape: f32[2,8], index: 0, kind: input, shape index: {}]
  %s1 = inlined_call_operand.vmem [shape: f32[1,16], index: 1, kind: output, shape index: {}]
  $region1: #{tile.9} parent=0
    #allocation0 [shape = 'u8[4096]{0}', space=vmem, size = 0x1000, scoped, tag = 'scoped mem for output reshape']
    #allocation1 [shape = 'u8[4096]{0}', space=vmem, size = 0x1000, scoped, tag = 'scoped mem for input reshape']
    %s3 = sshllo.u32 0, 2
    %v4 = vld [vmem:[%s0] sm:%s3]
    %5 = vst [vmem:[#allocation1] sm:%s3] %v4
    %v6 = vld [vmem:[#allocation1] sm:$0x1]
    %vm7 = vcmask 64512
    %8 = vst.msk [vmem:[#allocation0] sm:$0x1] %vm7, %v6
    %s9 = scalar_lea.vmem [#allocation1], 1
    %v10 = vld [vmem:[%s9] sm:$0x1]
    %11 = vrot.lane.b32.xlu0 %v10, 8
    %v12 = vpop.permute.xlu0 %11
    %vm13 = vcmask 130112
    %14 = vst.msk [vmem:[#allocation0] sm:$0x1] %vm13, %v12
    %s16 = sshllo.u32 0, 1
    %v18 = vld [vmem:[#allocation0] sm:%s16]
    %s19 = sshllo.u32 0, 1
    %20 = vst [vmem:[%s1] sm:%s19] %v18

// kernel: _lambda_.1
$region0: #{_lambda_.1}
  #allocation0 [shape = 'u32[]', space=smem, size = 0x4, offset = 0x4, fixed_abs, tag = 'smem constant byte address 0x4 - core index']
  #allocation1 [shape = 'u32[144,128]{1,0:T(1,128)}', space=vmem, size = 0x12000, scoped, tag = 'internal scratch']
  %s0 = inlined_call_operand.vmem [shape: bf16[512,4], index: 0, kind: input, shape index: {}]
  %s1 = inlined_call_operand.vmem [shape: bf16[2,4,16], index: 1, kind: input, shape index: {}]
  %s2 = inlined_call_operand.vmem [shape: f32[1,16], index: 2, kind: input, shape index: {}]
  %s3 = inlined_call_operand.vmem [shape: bf16[32,2,16,16], index: 3, kind: output, shape index: {}]
  %s4 = sld [smem:[#allocation0]]
  $region22: #{_lambda_.1} parent=0
    _
  %s6 = ssub.s32 1, %s4
  %s7 = scalar_select 0, %s6, %s4
  // Predicated region
  $region2: #{_lambda_.1} parent=0 // pred_check
    _
  $region3: #{_lambda_.1} parent=0 // pred_check_branch
    %9 = sbr.rel (0) target = $region5
  $region4: #{_lambda_.1} parent=0 // pred_region
    _
  $region5: #{_lambda_.1} parent=0 // pred_fallthru
    _
  // Predicated region
  $region6: #{_lambda_.1} parent=0 // pred_check
    _
  $region7: #{_lambda_.1} parent=0 // pred_check_branch
    %11 = sbr.rel (0) target = $region9
  $region8: #{_lambda_.1} parent=0 // pred_region
    _
  $region9: #{_lambda_.1} parent=0 // pred_fallthru
    _
  // Predicated region
  $region10: #{_lambda_.1} parent=0 // pred_check
    _
  $region11: #{_lambda_.1} parent=0 // pred_check_branch
    %13 = sbr.rel (0) target = $region13
  $region12: #{_lambda_.1} parent=0 // pred_region
    _
  $region13: #{_lambda_.1} parent=0 // pred_fallthru
    _
  %v15 = vld [vmem:[%s0] sm:$0xf]
  %v16 = vld [vmem:[%s0 + $0x4] sm:$0xf]
  %v17 = vld [vmem:[%s0 + $0x8] sm:$0xf]
  %v18 = vld [vmem:[%s0 + $0xc] sm:$0xf]
  %v19 = vld [vmem:[%s0 + $0x10] sm:$0xf]
  %v20 = vld [vmem:[%s0 + $0x14] sm:$0xf]
  %v21 = vld [vmem:[%s0 + $0x18] sm:$0xf]
  %v22 = vld [vmem:[%s0 + $0x1c] sm:$0xf]
  %v23 = vld [vmem:[%s0 + $0x20] sm:$0xf]
  %v24 = vld [vmem:[%s0 + $0x24] sm:$0xf]
  %v25 = vld [vmem:[%s0 + $0x28] sm:$0xf]
  %v26 = vld [vmem:[%s0 + $0x2c] sm:$0xf]
  %v27 = vld [vmem:[%s0 + $0x30] sm:$0xf]
  %v28 = vld [vmem:[%s0 + $0x34] sm:$0xf]
  %v29 = vld [vmem:[%s0 + $0x38] sm:$0xf]
  %v30 = vld [vmem:[%s0 + $0x3c] sm:$0xf]
  %v31 = vld [vmem:[%s0 + $0x40] sm:$0xf]
  %v32 = vld [vmem:[%s0 + $0x44] sm:$0xf]
  %v33 = vld [vmem:[%s0 + $0x48] sm:$0xf]
  %v34 = vld [vmem:[%s0 + $0x4c] sm:$0xf]
  %v35 = vld [vmem:[%s0 + $0x50] sm:$0xf]
  %v36 = vld [vmem:[%s0 + $0x54] sm:$0xf]
  %v37 = vld [vmem:[%s0 + $0x58] sm:$0xf]
  %v38 = vld [vmem:[%s0 + $0x5c] sm:$0xf]
  %v39 = vld [vmem:[%s0 + $0x60] sm:$0xf]
  %v40 = vld [vmem:[%s0 + $0x64] sm:$0xf]
  %v41 = vld [vmem:[%s0 + $0x68] sm:$0xf]
  %v42 = vld [vmem:[%s0 + $0x6c] sm:$0xf]
  %v43 = vld [vmem:[%s0 + $0x70] sm:$0xf]
  %v44 = vld [vmem:[%s0 + $0x74] sm:$0xf]
  %v45 = vld [vmem:[%s0 + $0x78] sm:$0xf]
  %v46 = vld [vmem:[%s0 + $0x7c] sm:$0xf]
  %v47 = vld [vmem:[%s0 + $0x80] sm:$0xf]
  %v48 = vld [vmem:[%s0 + $0x84] sm:$0xf]
  %v49 = vld [vmem:[%s0 + $0x88] sm:$0xf]
  %v50 = vld [vmem:[%s0 + $0x8c] sm:$0xf]
  %v51 = vld [vmem:[%s0 + $0x90] sm:$0xf]
  %v52 = vld [vmem:[%s0 + $0x94] sm:$0xf]
  %v53 = vld [vmem:[%s0 + $0x98] sm:$0xf]
  %v54 = vld [vmem:[%s0 + $0x9c] sm:$0xf]
  %v55 = vld [vmem:[%s0 + $0xa0] sm:$0xf]
  %v56 = vld [vmem:[%s0 + $0xa4] sm:$0xf]
  %v57 = vld [vmem:[%s0 + $0xa8] sm:$0xf]
  %v58 = vld [vmem:[%s0 + $0xac] sm:$0xf]
  %v59 = vld [vmem:[%s0 + $0xb0] sm:$0xf]
  %v60 = vld [vmem:[%s0 + $0xb4] sm:$0xf]
  %v61 = vld [vmem:[%s0 + $0xb8] sm:$0xf]
  %v62 = vld [vmem:[%s0 + $0xbc] sm:$0xf]
  %v63 = vld [vmem:[%s0 + $0xc0] sm:$0xf]
  %v64 = vld [vmem:[%s0 + $0xc4] sm:$0xf]
  %v65 = vld [vmem:[%s0 + $0xc8] sm:$0xf]
  %v66 = vld [vmem:[%s0 + $0xcc] sm:$0xf]
  %v67 = vld [vmem:[%s0 + $0xd0] sm:$0xf]
  %v68 = vld [vmem:[%s0 + $0xd4] sm:$0xf]
  %v69 = vld [vmem:[%s0 + $0xd8] sm:$0xf]
  %v70 = vld [vmem:[%s0 + $0xdc] sm:$0xf]
  %v71 = vld [vmem:[%s0 + $0xe0] sm:$0xf]
  %v72 = vld [vmem:[%s0 + $0xe4] sm:$0xf]
  %v73 = vld [vmem:[%s0 + $0xe8] sm:$0xf]
  %v74 = vld [vmem:[%s0 + $0xec] sm:$0xf]
  %v75 = vld [vmem:[%s0 + $0xf0] sm:$0xf]
  %v76 = vld [vmem:[%s0 + $0xf4] sm:$0xf]
  %v77 = vld [vmem:[%s0 + $0xf8] sm:$0xf]
  %v78 = vld [vmem:[%s0 + $0xfc] sm:$0xf]
  %v79 = vld [vmem:[%s2] sm:$0x1]
  %v80 = vld [vmem:[%s1] sm:$0x3]
  %v82 = vlaneseq
  %v83 = vshrl.u32 %v82, 7
  %v84 = vsub.s32 0, %v83
  %v85 = vrot.slane %v79, %v84
  %v151 = vunpack.c.l.b16 %v15
  %v152 = vunpack.c.l.b16 %v16
  %v153 = vunpack.c.l.b16 %v17
  %v154 = vunpack.c.l.b16 %v18
  %v155 = vunpack.c.l.b16 %v19
  %v156 = vunpack.c.l.b16 %v20
  %v157 = vunpack.c.l.b16 %v21
  %v158 = vunpack.c.l.b16 %v22
  %v159 = vunpack.c.l.b16 %v23
  %v160 = vunpack.c.l.b16 %v24
  %v161 = vunpack.c.l.b16 %v25
  %v162 = vunpack.c.l.b16 %v26
  %v163 = vunpack.c.l.b16 %v27
  %v164 = vunpack.c.l.b16 %v28
  %v165 = vunpack.c.l.b16 %v29
  %v166 = vunpack.c.l.b16 %v30
  %v167 = vunpack.c.l.b16 %v31
  %v168 = vunpack.c.l.b16 %v32
  %v169 = vunpack.c.l.b16 %v33
  %v170 = vunpack.c.l.b16 %v34
  %v171 = vunpack.c.l.b16 %v35
  %v172 = vunpack.c.l.b16 %v36
  %v173 = vunpack.c.l.b16 %v37
  %v174 = vunpack.c.l.b16 %v38
  %v175 = vunpack.c.l.b16 %v39
  %v176 = vunpack.c.l.b16 %v40
  %v177 = vunpack.c.l.b16 %v41
  %v178 = vunpack.c.l.b16 %v42
  %v179 = vunpack.c.l.b16 %v43
  %v180 = vunpack.c.l.b16 %v44
  %v181 = vunpack.c.l.b16 %v45
  %v182 = vunpack.c.l.b16 %v46
  %v183 = vunpack.c.l.b16 %v47
  %v184 = vunpack.c.l.b16 %v48
  %v185 = vunpack.c.l.b16 %v49
  %v186 = vunpack.c.l.b16 %v50
  %v187 = vunpack.c.l.b16 %v51
  %v188 = vunpack.c.l.b16 %v52
  %v189 = vunpack.c.l.b16 %v53
  %v190 = vunpack.c.l.b16 %v54
  %v191 = vunpack.c.l.b16 %v55
  %v192 = vunpack.c.l.b16 %v56
  %v193 = vunpack.c.l.b16 %v57
  %v194 = vunpack.c.l.b16 %v58
  %v195 = vunpack.c.l.b16 %v59
  %v196 = vunpack.c.l.b16 %v60
  %v197 = vunpack.c.l.b16 %v61
  %v198 = vunpack.c.l.b16 %v62
  %v199 = vunpack.c.l.b16 %v63
  %v200 = vunpack.c.l.b16 %v64
  %v201 = vunpack.c.l.b16 %v65
  %v202 = vunpack.c.l.b16 %v66
  %v203 = vunpack.c.l.b16 %v67
  %v204 = vunpack.c.l.b16 %v68
  %v205 = vunpack.c.l.b16 %v69
  %v206 = vunpack.c.l.b16 %v70
  %v207 = vunpack.c.l.b16 %v71
  %v208 = vunpack.c.l.b16 %v72
  %v209 = vunpack.c.l.b16 %v73
  %v210 = vunpack.c.l.b16 %v74
  %v211 = vunpack.c.l.b16 %v75
  %v212 = vunpack.c.l.b16 %v76
  %v213 = vunpack.c.l.b16 %v77
  %v214 = vunpack.c.l.b16 %v78
  %v215 = vpack.c.b16 %v152, %v151
  %v216 = vpack.c.b16 %v154, %v153
  %v217 = vpack.c.b16 %v156, %v155
  %v218 = vpack.c.b16 %v158, %v157
  %v219 = vpack.c.b16 %v160, %v159
  %v220 = vpack.c.b16 %v162, %v161
  %v221 = vpack.c.b16 %v164, %v163
  %v222 = vpack.c.b16 %v166, %v165
  %v223 = vpack.c.b16 %v168, %v167
  %v224 = vpack.c.b16 %v170, %v169
  %v225 = vpack.c.b16 %v172, %v171
  %v226 = vpack.c.b16 %v174, %v173
  %v227 = vpack.c.b16 %v176, %v175
  %v228 = vpack.c.b16 %v178, %v177
  %v229 = vpack.c.b16 %v180, %v179
  %v230 = vpack.c.b16 %v182, %v181
  %v231 = vpack.c.b16 %v184, %v183
  %v232 = vpack.c.b16 %v186, %v185
  %v233 = vpack.c.b16 %v188, %v187
  %v234 = vpack.c.b16 %v190, %v189
  %v235 = vpack.c.b16 %v192, %v191
  %v236 = vpack.c.b16 %v194, %v193
  %v237 = vpack.c.b16 %v196, %v195
  %v238 = vpack.c.b16 %v198, %v197
  %v239 = vpack.c.b16 %v200, %v199
  %v240 = vpack.c.b16 %v202, %v201
  %v241 = vpack.c.b16 %v204, %v203
  %v242 = vpack.c.b16 %v206, %v205
  %v243 = vpack.c.b16 %v208, %v207
  %v244 = vpack.c.b16 %v210, %v209
  %v245 = vpack.c.b16 %v212, %v211
  %v246 = vpack.c.b16 %v214, %v213
  %vm247 = vcmask 31744
  %v249 = vsel %vm247, %v215, 0
  %v252 = vsel %vm247, %v216, 0
  %v255 = vsel %vm247, %v217, 0
  %v258 = vsel %vm247, %v218, 0
  %v261 = vsel %vm247, %v219, 0
  %v264 = vsel %vm247, %v220, 0
  %v267 = vsel %vm247, %v221, 0
  %v270 = vsel %vm247, %v222, 0
  %v273 = vsel %vm247, %v223, 0
  %v276 = vsel %vm247, %v224, 0
  %v279 = vsel %vm247, %v225, 0
  %v282 = vsel %vm247, %v226, 0
  %v285 = vsel %vm247, %v227, 0
  %v288 = vsel %vm247, %v228, 0
  %v291 = vsel %vm247, %v229, 0
  %v294 = vsel %vm247, %v230, 0
  %v297 = vsel %vm247, %v231, 0
  %v300 = vsel %vm247, %v232, 0
  %v303 = vsel %vm247, %v233, 0
  %v306 = vsel %vm247, %v234, 0
  %v309 = vsel %vm247, %v235, 0
  %v312 = vsel %vm247, %v236, 0
  %v315 = vsel %vm247, %v237, 0
  %v318 = vsel %vm247, %v238, 0
  %v321 = vsel %vm247, %v239, 0
  %v324 = vsel %vm247, %v240, 0
  %v327 = vsel %vm247, %v241, 0
  %v330 = vsel %vm247, %v242, 0
  %v333 = vsel %vm247, %v243, 0
  %v336 = vsel %vm247, %v244, 0
  %v339 = vsel %vm247, %v245, 0
  %v342 = vsel %vm247, %v246, 0
  %vm344 = vcmask 1041408
  %v346 = vsel %vm344, %v80, 0
  %348 = vmatprep.subr.bf16.mxu0 0
  %349 = vmatpush1.bf16.msra.mxu0 %v346
  %350 = vmatprep.subr.bf16.mxu0 0
  %351 = vmatpush1.bf16.msra.mxu0 0
  %352 = vmatprep.subr.bf16.mxu0 0
  %353 = vmatpush1.bf16.msra.mxu0 0
  %354 = vmatprep.subr.bf16.mxu0 0
  %355 = vmatpush1.bf16.msra.mxu0 0
  %356 = vmatprep.subr.bf16.mxu0 0
  %357 = vmatpush1.bf16.msra.mxu0 0
  %358 = vmatprep.subr.bf16.mxu0 0
  %359 = vmatpush1.bf16.msra.mxu0 0
  %360 = vmatprep.subr.bf16.mxu0 0
  %361 = vmatpush1.bf16.msra.mxu0 0
  %362 = vmatprep.subr.bf16.mxu0 0
  %363 = vmatpush1.bf16.msra.mxu0 0
  %364 = vmatprep.subr.bf16.mxu0 0
  %365 = vmatpush1.bf16.msra.mxu0 0
  %366 = vmatprep.subr.bf16.mxu0 0
  %367 = vmatpush1.bf16.msra.mxu0 0
  %368 = vmatprep.subr.bf16.mxu0 0
  %369 = vmatpush1.bf16.msra.mxu0 0
  %370 = vmatprep.subr.bf16.mxu0 0
  %371 = vmatpush1.bf16.msra.mxu0 0
  %372 = vmatprep.subr.bf16.mxu0 0
  %373 = vmatpush1.bf16.msra.mxu0 0
  %374 = vmatprep.subr.bf16.mxu0 0
  %375 = vmatpush1.bf16.msra.mxu0 0
  %376 = vmatprep.subr.bf16.mxu0 0
  %377 = vmatpush1.bf16.msra.mxu0 0
  %378 = vmatprep.subr.bf16.mxu0 0
  %379 = vmatpush1.bf16.msra.mxu0 0
  %380 = vmatprep.mubr.bf16.mxu0 0
  %381 = vmatmul.mubr.bf16.gmra.mrb[0].mxu0 %v249
  %v382 = vpop.f32.mrb[0].mxu0
  %v383 = vadd.f32 %v85, %v382
  %v384 = vpop.f32.mrb[0].mxu0
  %v385 = vpop.f32.mrb[0].mxu0
  %v386 = vadd.f32 %v85, %v385
  %v387 = vpop.f32.mrb[0].mxu0
  %388 = vmatprep.mubr.bf16.mxu0 0
  %389 = vmatmul.mubr.bf16.gmra.mrb[0].mxu0 %v252
  %v390 = vpop.f32.mrb[0].mxu0
  %v391 = vadd.f32 %v85, %v390
  %v392 = vpop.f32.mrb[0].mxu0
  %v393 = vpop.f32.mrb[0].mxu0
  %v394 = vadd.f32 %v85, %v393
  %v395 = vpop.f32.mrb[0].mxu0
  %396 = vmatprep.mubr.bf16.mxu0 0
  %397 = vmatmul.mubr.bf16.gmra.mrb[0].mxu0 %v255
  %v398 = vpop.f32.mrb[0].mxu0
  %v399 = vadd.f32 %v85, %v398
  %v400 = vpop.f32.mrb[0].mxu0
  %v401 = vpop.f32.mrb[0].mxu0
  %v402 = vadd.f32 %v85, %v401
  %v403 = vpop.f32.mrb[0].mxu0
  %404 = vmatprep.mubr.bf16.mxu0 0
  %405 = vmatmul.mubr.bf16.gmra.mrb[0].mxu0 %v258
  %v406 = vpop.f32.mrb[0].mxu0
  %v407 = vadd.f32 %v85, %v406
  %v408 = vpop.f32.mrb[0].mxu0
  %v409 = vpop.f32.mrb[0].mxu0
  %v410 = vadd.f32 %v85, %v409
  %v411 = vpop.f32.mrb[0].mxu0
  %412 = vmatprep.mubr.bf16.mxu0 0
  %413 = vmatmul.mubr.bf16.gmra.mrb[0].mxu0 %v261
  %v414 = vpop.f32.mrb[0].mxu0
  %v415 = vadd.f32 %v85, %v414
  %v416 = vpop.f32.mrb[0].mxu0
  %v417 = vpop.f32.mrb[0].mxu0
  %v418 = vadd.f32 %v85, %v417
  %v419 = vpop.f32.mrb[0].mxu0
  %420 = vmatprep.mubr.bf16.mxu0 0
  %421 = vmatmul.mubr.bf16.gmra.mrb[0].mxu0 %v264
  %v422 = vpop.f32.mrb[0].mxu0
  %v423 = vadd.f32 %v85, %v422
  %v424 = vpop.f32.mrb[0].mxu0
  %v425 = vpop.f32.mrb[0].mxu0
  %v426 = vadd.f32 %v85, %v425
  %v427 = vpop.f32.mrb[0].mxu0
  %428 = vmatprep.mubr.bf16.mxu0 0
  %429 = vmatmul.mubr.bf16.gmra.mrb[0].mxu0 %v267
  %v430 = vpop.f32.mrb[0].mxu0
  %v431 = vadd.f32 %v85, %v430
  %v432 = vpop.f32.mrb[0].mxu0
  %v433 = vpop.f32.mrb[0].mxu0
  %v434 = vadd.f32 %v85, %v433
  %v435 = vpop.f32.mrb[0].mxu0
  %436 = vmatprep.mubr.bf16.mxu0 0
  %437 = vmatmul.mubr.bf16.gmra.mrb[0].mxu0 %v270
  %v438 = vpop.f32.mrb[0].mxu0
  %v439 = vadd.f32 %v85, %v438
  %v440 = vpop.f32.mrb[0].mxu0
  %v441 = vpop.f32.mrb[0].mxu0
  %v442 = vadd.f32 %v85, %v441
  %v443 = vpop.f32.mrb[0].mxu0
  %444 = vmatprep.mubr.bf16.mxu0 0
  %445 = vmatmul.mubr.bf16.gmra.mrb[0].mxu0 %v273
  %v446 = vpop.f32.mrb[0].mxu0
  %v447 = vadd.f32 %v85, %v446
  %v448 = vpop.f32.mrb[0].mxu0
  %v449 = vpop.f32.mrb[0].mxu0
  %v450 = vadd.f32 %v85, %v449
  %v451 = vpop.f32.mrb[0].mxu0
  %452 = vmatprep.mubr.bf16.mxu0 0
  %453 = vmatmul.mubr.bf16.gmra.mrb[0].mxu0 %v276
  %v454 = vpop.f32.mrb[0].mxu0
  %v455 = vadd.f32 %v85, %v454
  %v456 = vpop.f32.mrb[0].mxu0
  %v457 = vpop.f32.mrb[0].mxu0
  %v458 = vadd.f32 %v85, %v457
  %v459 = vpop.f32.mrb[0].mxu0
  %460 = vmatprep.mubr.bf16.mxu0 0
  %461 = vmatmul.mubr.bf16.gmra.mrb[0].mxu0 %v279
  %v462 = vpop.f32.mrb[0].mxu0
  %v463 = vadd.f32 %v85, %v462
  %v464 = vpop.f32.mrb[0].mxu0
  %v465 = vpop.f32.mrb[0].mxu0
  %v466 = vadd.f32 %v85, %v465
  %v467 = vpop.f32.mrb[0].mxu0
  %468 = vmatprep.mubr.bf16.mxu0 0
  %469 = vmatmul.mubr.bf16.gmra.mrb[0].mxu0 %v282
  %v470 = vpop.f32.mrb[0].mxu0
  %v471 = vadd.f32 %v85, %v470
  %v472 = vpop.f32.mrb[0].mxu0
  %v473 = vpop.f32.mrb[0].mxu0
  %v474 = vadd.f32 %v85, %v473
  %v475 = vpop.f32.mrb[0].mxu0
  %476 = vmatprep.mubr.bf16.mxu0 0
  %477 = vmatmul.mubr.bf16.gmra.mrb[0].mxu0 %v285
  %v478 = vpop.f32.mrb[0].mxu0
  %v479 = vadd.f32 %v85, %v478
  %v480 = vpop.f32.mrb[0].mxu0
  %v481 = vpop.f32.mrb[0].mxu0
  %v482 = vadd.f32 %v85, %v481
  %v483 = vpop.f32.mrb[0].mxu0
  %484 = vmatprep.mubr.bf16.mxu0 0
  %485 = vmatmul.mubr.bf16.gmra.mrb[0].mxu0 %v288
  %v486 = vpop.f32.mrb[0].mxu0
  %v487 = vadd.f32 %v85, %v486
  %v488 = vpop.f32.mrb[0].mxu0
  %v489 = vpop.f32.mrb[0].mxu0
  %v490 = vadd.f32 %v85, %v489
  %v491 = vpop.f32.mrb[0].mxu0
  %492 = vmatprep.mubr.bf16.mxu0 0
  %493 = vmatmul.mubr.bf16.gmra.mrb[0].mxu0 %v291
  %v494 = vpop.f32.mrb[0].mxu0
  %v495 = vadd.f32 %v85, %v494
  %v496 = vpop.f32.mrb[0].mxu0
  %v497 = vpop.f32.mrb[0].mxu0
  %v498 = vadd.f32 %v85, %v497
  %v499 = vpop.f32.mrb[0].mxu0
  %500 = vmatprep.mubr.bf16.mxu0 0
  %501 = vmatmul.mubr.bf16.gmra.mrb[0].mxu0 %v294
  %v502 = vpop.f32.mrb[0].mxu0
  %v503 = vadd.f32 %v85, %v502
  %v504 = vpop.f32.mrb[0].mxu0
  %v505 = vpop.f32.mrb[0].mxu0
  %v506 = vadd.f32 %v85, %v505
  %v507 = vpop.f32.mrb[0].mxu0
  %508 = vmatprep.mubr.bf16.mxu0 0
  %509 = vmatmul.mubr.bf16.gmra.mrb[0].mxu0 %v297
  %v510 = vpop.f32.mrb[0].mxu0
  %v511 = vadd.f32 %v85, %v510
  %v512 = vpop.f32.mrb[0].mxu0
  %v513 = vpop.f32.mrb[0].mxu0
  %v514 = vadd.f32 %v85, %v513
  %v515 = vpop.f32.mrb[0].mxu0
  %516 = vmatprep.mubr.bf16.mxu0 0
  %517 = vmatmul.mubr.bf16.gmra.mrb[0].mxu0 %v300
  %v518 = vpop.f32.mrb[0].mxu0
  %v519 = vadd.f32 %v85, %v518
  %v520 = vpop.f32.mrb[0].mxu0
  %v521 = vpop.f32.mrb[0].mxu0
  %v522 = vadd.f32 %v85, %v521
  %v523 = vpop.f32.mrb[0].mxu0
  %524 = vmatprep.mubr.bf16.mxu0 0
  %525 = vmatmul.mubr.bf16.gmra.mrb[0].mxu0 %v303
  %v526 = vpop.f32.mrb[0].mxu0
  %v527 = vadd.f32 %v85, %v526
  %v528 = vpop.f32.mrb[0].mxu0
  %v529 = vpop.f32.mrb[0].mxu0
  %v530 = vadd.f32 %v85, %v529
  %v531 = vpop.f32.mrb[0].mxu0
  %532 = vmatprep.mubr.bf16.mxu0 0
  %533 = vmatmul.mubr.bf16.gmra.mrb[0].mxu0 %v306
  %v534 = vpop.f32.mrb[0].mxu0
  %v535 = vadd.f32 %v85, %v534
  %v536 = vpop.f32.mrb[0].mxu0
  %v537 = vpop.f32.mrb[0].mxu0
  %v538 = vadd.f32 %v85, %v537
  %v539 = vpop.f32.mrb[0].mxu0
  %540 = vmatprep.mubr.bf16.mxu0 0
  %541 = vmatmul.mubr.bf16.gmra.mrb[0].mxu0 %v309
  %v542 = vpop.f32.mrb[0].mxu0
  %v543 = vadd.f32 %v85, %v542
  %v544 = vpop.f32.mrb[0].mxu0
  %v545 = vpop.f32.mrb[0].mxu0
  %v546 = vadd.f32 %v85, %v545
  %v547 = vpop.f32.mrb[0].mxu0
  %548 = vmatprep.mubr.bf16.mxu0 0
  %549 = vmatmul.mubr.bf16.gmra.mrb[0].mxu0 %v312
  %v550 = vpop.f32.mrb[0].mxu0
  %v551 = vadd.f32 %v85, %v550
  %v552 = vpop.f32.mrb[0].mxu0
  %v553 = vpop.f32.mrb[0].mxu0
  %v554 = vadd.f32 %v85, %v553
  %v555 = vpop.f32.mrb[0].mxu0
  %556 = vmatprep.mubr.bf16.mxu0 0
  %557 = vmatmul.mubr.bf16.gmra.mrb[0].mxu0 %v315
  %v558 = vpop.f32.mrb[0].mxu0
  %v559 = vadd.f32 %v85, %v558
  %v560 = vpop.f32.mrb[0].mxu0
  %v561 = vpop.f32.mrb[0].mxu0
  %v562 = vadd.f32 %v85, %v561
  %v563 = vpop.f32.mrb[0].mxu0
  %564 = vmatprep.mubr.bf16.mxu0 0
  %565 = vmatmul.mubr.bf16.gmra.mrb[0].mxu0 %v318
  %v566 = vpop.f32.mrb[0].mxu0
  %v567 = vadd.f32 %v85, %v566
  %v568 = vpop.f32.mrb[0].mxu0
  %v569 = vpop.f32.mrb[0].mxu0
  %v570 = vadd.f32 %v85, %v569
  %v571 = vpop.f32.mrb[0].mxu0
  %572 = vmatprep.mubr.bf16.mxu0 0
  %573 = vmatmul.mubr.bf16.gmra.mrb[0].mxu0 %v321
  %v574 = vpop.f32.mrb[0].mxu0
  %v575 = vadd.f32 %v85, %v574
  %v576 = vpop.f32.mrb[0].mxu0
  %v577 = vpop.f32.mrb[0].mxu0
  %v578 = vadd.f32 %v85, %v577
  %v579 = vpop.f32.mrb[0].mxu0
  %580 = vmatprep.mubr.bf16.mxu0 0
  %581 = vmatmul.mubr.bf16.gmra.mrb[0].mxu0 %v324
  %v582 = vpop.f32.mrb[0].mxu0
  %v583 = vadd.f32 %v85, %v582
  %v584 = vpop.f32.mrb[0].mxu0
  %v585 = vpop.f32.mrb[0].mxu0
  %v586 = vadd.f32 %v85, %v585
  %v587 = vpop.f32.mrb[0].mxu0
  %588 = vmatprep.mubr.bf16.mxu0 0
  %589 = vmatmul.mubr.bf16.gmra.mrb[0].mxu0 %v327
  %v590 = vpop.f32.mrb[0].mxu0
  %v591 = vadd.f32 %v85, %v590
  %v592 = vpop.f32.mrb[0].mxu0
  %v593 = vpop.f32.mrb[0].mxu0
  %v594 = vadd.f32 %v85, %v593
  %v595 = vpop.f32.mrb[0].mxu0
  %596 = vmatprep.mubr.bf16.mxu0 0
  %597 = vmatmul.mubr.bf16.gmra.mrb[0].mxu0 %v330
  %v598 = vpop.f32.mrb[0].mxu0
  %v599 = vadd.f32 %v85, %v598
  %v600 = vpop.f32.mrb[0].mxu0
  %v601 = vpop.f32.mrb[0].mxu0
  %v602 = vadd.f32 %v85, %v601
  %v603 = vpop.f32.mrb[0].mxu0
  %604 = vmatprep.mubr.bf16.mxu0 0
  %605 = vmatmul.mubr.bf16.gmra.mrb[0].mxu0 %v333
  %v606 = vpop.f32.mrb[0].mxu0
  %v607 = vadd.f32 %v85, %v606
  %v608 = vpop.f32.mrb[0].mxu0
  %v609 = vpop.f32.mrb[0].mxu0
  %v610 = vadd.f32 %v85, %v609
  %v611 = vpop.f32.mrb[0].mxu0
  %612 = vmatprep.mubr.bf16.mxu0 0
  %613 = vmatmul.mubr.bf16.gmra.mrb[0].mxu0 %v336
  %v614 = vpop.f32.mrb[0].mxu0
  %v615 = vadd.f32 %v85, %v614
  %v616 = vpop.f32.mrb[0].mxu0
  %v617 = vpop.f32.mrb[0].mxu0
  %v618 = vadd.f32 %v85, %v617
  %v619 = vpop.f32.mrb[0].mxu0
  %620 = vmatprep.mubr.bf16.mxu0 0
  %621 = vmatmul.mubr.bf16.gmra.mrb[0].mxu0 %v339
  %v622 = vpop.f32.mrb[0].mxu0
  %v623 = vadd.f32 %v85, %v622
  %v624 = vpop.f32.mrb[0].mxu0
  %v625 = vpop.f32.mrb[0].mxu0
  %v626 = vadd.f32 %v85, %v625
  %v627 = vpop.f32.mrb[0].mxu0
  %628 = vmatprep.mubr.bf16.mxu0 0
  %629 = vmatmul.mubr.bf16.gmra.mrb[0].mxu0 %v342
  %v630 = vpop.f32.mrb[0].mxu0
  %v631 = vadd.f32 %v85, %v630
  %v632 = vpop.f32.mrb[0].mxu0
  %v633 = vpop.f32.mrb[0].mxu0
  %v634 = vadd.f32 %v85, %v633
  %v635 = vpop.f32.mrb[0].mxu0
  %636 = vdwg.mxu0
  %v637 = vsub.f32 0.0, %v383
  %v638 = vsub.f32 0.0, %v386
  %v639 = vsub.f32 0.0, %v391
  %v640 = vsub.f32 0.0, %v394
  %v641 = vsub.f32 0.0, %v399
  %v642 = vsub.f32 0.0, %v402
  %v643 = vsub.f32 0.0, %v407
  %v644 = vsub.f32 0.0, %v410
  %v645 = vsub.f32 0.0, %v415
  %v646 = vsub.f32 0.0, %v418
  %v647 = vsub.f32 0.0, %v423
  %v648 = vsub.f32 0.0, %v426
  %v649 = vsub.f32 0.0, %v431
  %v650 = vsub.f32 0.0, %v434
  %v651 = vsub.f32 0.0, %v439
  %v652 = vsub.f32 0.0, %v442
  %v653 = vsub.f32 0.0, %v447
  %v654 = vsub.f32 0.0, %v450
  %v655 = vsub.f32 0.0, %v455
  %v656 = vsub.f32 0.0, %v458
  %v657 = vsub.f32 0.0, %v463
  %v658 = vsub.f32 0.0, %v466
  %v659 = vsub.f32 0.0, %v471
  %v660 = vsub.f32 0.0, %v474
  %v661 = vsub.f32 0.0, %v479
  %v662 = vsub.f32 0.0, %v482
  %v663 = vsub.f32 0.0, %v487
  %v664 = vsub.f32 0.0, %v490
  %v665 = vsub.f32 0.0, %v495
  %v666 = vsub.f32 0.0, %v498
  %v667 = vsub.f32 0.0, %v503
  %v668 = vsub.f32 0.0, %v506
  %v669 = vsub.f32 0.0, %v511
  %v670 = vsub.f32 0.0, %v514
  %v671 = vsub.f32 0.0, %v519
  %v672 = vsub.f32 0.0, %v522
  %v673 = vsub.f32 0.0, %v527
  %v674 = vsub.f32 0.0, %v530
  %v675 = vsub.f32 0.0, %v535
  %v676 = vsub.f32 0.0, %v538
  %v677 = vsub.f32 0.0, %v543
  %v678 = vsub.f32 0.0, %v546
  %v679 = vsub.f32 0.0, %v551
  %v680 = vsub.f32 0.0, %v554
  %v681 = vsub.f32 0.0, %v559
  %v682 = vsub.f32 0.0, %v562
  %v683 = vsub.f32 0.0, %v567
  %v684 = vsub.f32 0.0, %v570
  %v685 = vsub.f32 0.0, %v575
  %v686 = vsub.f32 0.0, %v578
  %v687 = vsub.f32 0.0, %v583
  %v688 = vsub.f32 0.0, %v586
  %v689 = vsub.f32 0.0, %v591
  %v690 = vsub.f32 0.0, %v594
  %v691 = vsub.f32 0.0, %v599
  %v692 = vsub.f32 0.0, %v602
  %v693 = vsub.f32 0.0, %v607
  %v694 = vsub.f32 0.0, %v610
  %v695 = vsub.f32 0.0, %v615
  %v696 = vsub.f32 0.0, %v618
  %v697 = vsub.f32 0.0, %v623
  %v698 = vsub.f32 0.0, %v626
  %v699 = vsub.f32 0.0, %v631
  %v700 = vsub.f32 0.0, %v634
  %v701 = vmul.f32 %v637, 1.442695
  %v702 = vpow.pop %v701
  %v703 = vmul.f32 %v638, 1.442695
  %v704 = vpow.pop %v703
  %v705 = vmul.f32 %v639, 1.442695
  %v706 = vpow.pop %v705
  %v707 = vmul.f32 %v640, 1.442695
  %v708 = vpow.pop %v707
  %v709 = vmul.f32 %v641, 1.442695
  %v710 = vpow.pop %v709
  %v711 = vmul.f32 %v642, 1.442695
  %v712 = vpow.pop %v711
  %v713 = vmul.f32 %v643, 1.442695
  %v714 = vpow.pop %v713
  %v715 = vmul.f32 %v644, 1.442695
  %v716 = vpow.pop %v715
  %v717 = vmul.f32 %v645, 1.442695
  %v718 = vpow.pop %v717
  %v719 = vmul.f32 %v646, 1.442695
  %v720 = vpow.pop %v719
  %v721 = vmul.f32 %v647, 1.442695
  %v722 = vpow.pop %v721
  %v723 = vmul.f32 %v648, 1.442695
  %v724 = vpow.pop %v723
  %v725 = vmul.f32 %v649, 1.442695
  %v726 = vpow.pop %v725
  %v727 = vmul.f32 %v650, 1.442695
  %v728 = vpow.pop %v727
  %v729 = vmul.f32 %v651, 1.442695
  %v730 = vpow.pop %v729
  %v731 = vmul.f32 %v652, 1.442695
  %v732 = vpow.pop %v731
  %v733 = vmul.f32 %v653, 1.442695
  %v734 = vpow.pop %v733
  %v735 = vmul.f32 %v654, 1.442695
  %v736 = vpow.pop %v735
  %v737 = vmul.f32 %v655, 1.442695
  %v738 = vpow.pop %v737
  %v739 = vmul.f32 %v656, 1.442695
  %v740 = vpow.pop %v739
  %v741 = vmul.f32 %v657, 1.442695
  %v742 = vpow.pop %v741
  %v743 = vmul.f32 %v658, 1.442695
  %v744 = vpow.pop %v743
  %v745 = vmul.f32 %v659, 1.442695
  %v746 = vpow.pop %v745
  %v747 = vmul.f32 %v660, 1.442695
  %v748 = vpow.pop %v747
  %v749 = vmul.f32 %v661, 1.442695
  %v750 = vpow.pop %v749
  %v751 = vmul.f32 %v662, 1.442695
  %v752 = vpow.pop %v751
  %v753 = vmul.f32 %v663, 1.442695
  %v754 = vpow.pop %v753
  %v755 = vmul.f32 %v664, 1.442695
  %v756 = vpow.pop %v755
  %v757 = vmul.f32 %v665, 1.442695
  %v758 = vpow.pop %v757
  %v759 = vmul.f32 %v666, 1.442695
  %v760 = vpow.pop %v759
  %v761 = vmul.f32 %v667, 1.442695
  %v762 = vpow.pop %v761
  %v763 = vmul.f32 %v668, 1.442695
  %v764 = vpow.pop %v763
  %v765 = vmul.f32 %v669, 1.442695
  %v766 = vpow.pop %v765
  %v767 = vmul.f32 %v670, 1.442695
  %v768 = vpow.pop %v767
  %v769 = vmul.f32 %v671, 1.442695
  %v770 = vpow.pop %v769
  %v771 = vmul.f32 %v672, 1.442695
  %v772 = vpow.pop %v771
  %v773 = vmul.f32 %v673, 1.442695
  %v774 = vpow.pop %v773
  %v775 = vmul.f32 %v674, 1.442695
  %v776 = vpow.pop %v775
  %v777 = vmul.f32 %v675, 1.442695
  %v778 = vpow.pop %v777
  %v779 = vmul.f32 %v676, 1.442695
  %v780 = vpow.pop %v779
  %v781 = vmul.f32 %v677, 1.442695
  %v782 = vpow.pop %v781
  %v783 = vmul.f32 %v678, 1.442695
  %v784 = vpow.pop %v783
  %v785 = vmul.f32 %v679, 1.442695
  %v786 = vpow.pop %v785
  %v787 = vmul.f32 %v680, 1.442695
  %v788 = vpow.pop %v787
  %v789 = vmul.f32 %v681, 1.442695
  %v790 = vpow.pop %v789
  %v791 = vmul.f32 %v682, 1.442695
  %v792 = vpow.pop %v791
  %v793 = vmul.f32 %v683, 1.442695
  %v794 = vpow.pop %v793
  %v795 = vmul.f32 %v684, 1.442695
  %v796 = vpow.pop %v795
  %v797 = vmul.f32 %v685, 1.442695
  %v798 = vpow.pop %v797
  %v799 = vmul.f32 %v686, 1.442695
  %v800 = vpow.pop %v799
  %v801 = vmul.f32 %v687, 1.442695
  %v802 = vpow.pop %v801
  %v803 = vmul.f32 %v688, 1.442695
  %v804 = vpow.pop %v803
  %v805 = vmul.f32 %v689, 1.442695
  %v806 = vpow.pop %v805
  %v807 = vmul.f32 %v690, 1.442695
  %v808 = vpow.pop %v807
  %v809 = vmul.f32 %v691, 1.442695
  %v810 = vpow.pop %v809
  %v811 = vmul.f32 %v692, 1.442695
  %v812 = vpow.pop %v811
  %v813 = vmul.f32 %v693, 1.442695
  %v814 = vpow.pop %v813
  %v815 = vmul.f32 %v694, 1.442695
  %v816 = vpow.pop %v815
  %v817 = vmul.f32 %v695, 1.442695
  %v818 = vpow.pop %v817
  %v819 = vmul.f32 %v696, 1.442695
  %v820 = vpow.pop %v819
  %v821 = vmul.f32 %v697, 1.442695
  %v822 = vpow.pop %v821
  %v823 = vmul.f32 %v698, 1.442695
  %v824 = vpow.pop %v823
  %v825 = vmul.f32 %v699, 1.442695
  %v826 = vpow.pop %v825
  %v827 = vmul.f32 %v700, 1.442695
  %v828 = vpow.pop %v827
  %v829 = vadd.f32 %v702, 1.0
  %v830 = vadd.f32 %v704, 1.0
  %v831 = vadd.f32 %v706, 1.0
  %v832 = vadd.f32 %v708, 1.0
  %v833 = vadd.f32 %v710, 1.0
  %v834 = vadd.f32 %v712, 1.0
  %v835 = vadd.f32 %v714, 1.0
  %v836 = vadd.f32 %v716, 1.0
  %v837 = vadd.f32 %v718, 1.0
  %v838 = vadd.f32 %v720, 1.0
  %v839 = vadd.f32 %v722, 1.0
  %v840 = vadd.f32 %v724, 1.0
  %v841 = vadd.f32 %v726, 1.0
  %v842 = vadd.f32 %v728, 1.0
  %v843 = vadd.f32 %v730, 1.0
  %v844 = vadd.f32 %v732, 1.0
  %v845 = vadd.f32 %v734, 1.0
  %v846 = vadd.f32 %v736, 1.0
  %v847 = vadd.f32 %v738, 1.0
  %v848 = vadd.f32 %v740, 1.0
  %v849 = vadd.f32 %v742, 1.0
  %v850 = vadd.f32 %v744, 1.0
  %v851 = vadd.f32 %v746, 1.0
  %v852 = vadd.f32 %v748, 1.0
  %v853 = vadd.f32 %v750, 1.0
  %v854 = vadd.f32 %v752, 1.0
  %v855 = vadd.f32 %v754, 1.0
  %v856 = vadd.f32 %v756, 1.0
  %v857 = vadd.f32 %v758, 1.0
  %v858 = vadd.f32 %v760, 1.0
  %v859 = vadd.f32 %v762, 1.0
  %v860 = vadd.f32 %v764, 1.0
  %v861 = vadd.f32 %v766, 1.0
  %v862 = vadd.f32 %v768, 1.0
  %v863 = vadd.f32 %v770, 1.0
  %v864 = vadd.f32 %v772, 1.0
  %v865 = vadd.f32 %v774, 1.0
  %v866 = vadd.f32 %v776, 1.0
  %v867 = vadd.f32 %v778, 1.0
  %v868 = vadd.f32 %v780, 1.0
  %v869 = vadd.f32 %v782, 1.0
  %v870 = vadd.f32 %v784, 1.0
  %v871 = vadd.f32 %v786, 1.0
  %v872 = vadd.f32 %v788, 1.0
  %v873 = vadd.f32 %v790, 1.0
  %v874 = vadd.f32 %v792, 1.0
  %v875 = vadd.f32 %v794, 1.0
  %v876 = vadd.f32 %v796, 1.0
  %v877 = vadd.f32 %v798, 1.0
  %v878 = vadd.f32 %v800, 1.0
  %v879 = vadd.f32 %v802, 1.0
  %v880 = vadd.f32 %v804, 1.0
  %v881 = vadd.f32 %v806, 1.0
  %v882 = vadd.f32 %v808, 1.0
  %v883 = vadd.f32 %v810, 1.0
  %v884 = vadd.f32 %v812, 1.0
  %v885 = vadd.f32 %v814, 1.0
  %v886 = vadd.f32 %v816, 1.0
  %v887 = vadd.f32 %v818, 1.0
  %v888 = vadd.f32 %v820, 1.0
  %v889 = vadd.f32 %v822, 1.0
  %v890 = vadd.f32 %v824, 1.0
  %v891 = vadd.f32 %v826, 1.0
  %v892 = vadd.f32 %v828, 1.0
  %v893 = vrcp.pop %v829
  %v894 = vrcp.pop %v830
  %v895 = vrcp.pop %v831
  %v896 = vrcp.pop %v832
  %v897 = vrcp.pop %v833
  %v898 = vrcp.pop %v834
  %v899 = vrcp.pop %v835
  %v900 = vrcp.pop %v836
  %v901 = vrcp.pop %v837
  %v902 = vrcp.pop %v838
  %v903 = vrcp.pop %v839
  %v904 = vrcp.pop %v840
  %v905 = vrcp.pop %v841
  %v906 = vrcp.pop %v842
  %v907 = vrcp.pop %v843
  %v908 = vrcp.pop %v844
  %v909 = vrcp.pop %v845
  %v910 = vrcp.pop %v846
  %v911 = vrcp.pop %v847
  %v912 = vrcp.pop %v848
  %v913 = vrcp.pop %v849
  %v914 = vrcp.pop %v850
  %v915 = vrcp.pop %v851
  %v916 = vrcp.pop %v852
  %v917 = vrcp.pop %v853
  %v918 = vrcp.pop %v854
  %v919 = vrcp.pop %v855
  %v920 = vrcp.pop %v856
  %v921 = vrcp.pop %v857
  %v922 = vrcp.pop %v858
  %v923 = vrcp.pop %v859
  %v924 = vrcp.pop %v860
  %v925 = vrcp.pop %v861
  %v926 = vrcp.pop %v862
  %v927 = vrcp.pop %v863
  %v928 = vrcp.pop %v864
  %v929 = vrcp.pop %v865
  %v930 = vrcp.pop %v866
  %v931 = vrcp.pop %v867
  %v932 = vrcp.pop %v868
  %v933 = vrcp.pop %v869
  %v934 = vrcp.pop %v870
  %v935 = vrcp.pop %v871
  %v936 = vrcp.pop %v872
  %v937 = vrcp.pop %v873
  %v938 = vrcp.pop %v874
  %v939 = vrcp.pop %v875
  %v940 = vrcp.pop %v876
  %v941 = vrcp.pop %v877
  %v942 = vrcp.pop %v878
  %v943 = vrcp.pop %v879
  %v944 = vrcp.pop %v880
  %v945 = vrcp.pop %v881
  %v946 = vrcp.pop %v882
  %v947 = vrcp.pop %v883
  %v948 = vrcp.pop %v884
  %v949 = vrcp.pop %v885
  %v950 = vrcp.pop %v886
  %v951 = vrcp.pop %v887
  %v952 = vrcp.pop %v888
  %v953 = vrcp.pop %v889
  %v954 = vrcp.pop %v890
  %v955 = vrcp.pop %v891
  %v956 = vrcp.pop %v892
  %v957 = vmul.f32 %v383, %v893
  %v958 = vmul.f32 %v386, %v894
  %v959 = vmul.f32 %v391, %v895
  %v960 = vmul.f32 %v394, %v896
  %v961 = vmul.f32 %v399, %v897
  %v962 = vmul.f32 %v402, %v898
  %v963 = vmul.f32 %v407, %v899
  %v964 = vmul.f32 %v410, %v900
  %v965 = vmul.f32 %v415, %v901
  %v966 = vmul.f32 %v418, %v902
  %v967 = vmul.f32 %v423, %v903
  %v968 = vmul.f32 %v426, %v904
  %v969 = vmul.f32 %v431, %v905
  %v970 = vmul.f32 %v434, %v906
  %v971 = vmul.f32 %v439, %v907
  %v972 = vmul.f32 %v442, %v908
  %v973 = vmul.f32 %v447, %v909
  %v974 = vmul.f32 %v450, %v910
  %v975 = vmul.f32 %v455, %v911
  %v976 = vmul.f32 %v458, %v912
  %v977 = vmul.f32 %v463, %v913
  %v978 = vmul.f32 %v466, %v914
  %v979 = vmul.f32 %v471, %v915
  %v980 = vmul.f32 %v474, %v916
  %v981 = vmul.f32 %v479, %v917
  %v982 = vmul.f32 %v482, %v918
  %v983 = vmul.f32 %v487, %v919
  %v984 = vmul.f32 %v490, %v920
  %v985 = vmul.f32 %v495, %v921
  %v986 = vmul.f32 %v498, %v922
  %v987 = vmul.f32 %v503, %v923
  %v988 = vmul.f32 %v506, %v924
  %v989 = vmul.f32 %v511, %v925
  %v990 = vmul.f32 %v514, %v926
  %v991 = vmul.f32 %v519, %v927
  %v992 = vmul.f32 %v522, %v928
  %v993 = vmul.f32 %v527, %v929
  %v994 = vmul.f32 %v530, %v930
  %v995 = vmul.f32 %v535, %v931
  %v996 = vmul.f32 %v538, %v932
  %v997 = vmul.f32 %v543, %v933
  %v998 = vmul.f32 %v546, %v934
  %v999 = vmul.f32 %v551, %v935
  %v1000 = vmul.f32 %v554, %v936
  %v1001 = vmul.f32 %v559, %v937
  %v1002 = vmul.f32 %v562, %v938
  %v1003 = vmul.f32 %v567, %v939
  %v1004 = vmul.f32 %v570, %v940
  %v1005 = vmul.f32 %v575, %v941
  %v1006 = vmul.f32 %v578, %v942
  %v1007 = vmul.f32 %v583, %v943
  %v1008 = vmul.f32 %v586, %v944
  %v1009 = vmul.f32 %v591, %v945
  %v1010 = vmul.f32 %v594, %v946
  %v1011 = vmul.f32 %v599, %v947
  %v1012 = vmul.f32 %v602, %v948
  %v1013 = vmul.f32 %v607, %v949
  %v1014 = vmul.f32 %v610, %v950
  %v1015 = vmul.f32 %v615, %v951
  %v1016 = vmul.f32 %v618, %v952
  %v1017 = vmul.f32 %v623, %v953
  %v1018 = vmul.f32 %v626, %v954
  %v1019 = vmul.f32 %v631, %v955
  %v1020 = vmul.f32 %v634, %v956
  %v1021 = vpack.c.bf16 %v958, %v957
  %v1022 = vpack.c.bf16 %v960, %v959
  %v1023 = vpack.c.bf16 %v962, %v961
  %v1024 = vpack.c.bf16 %v964, %v963
  %v1025 = vpack.c.bf16 %v966, %v965
  %v1026 = vpack.c.bf16 %v968, %v967
  %v1027 = vpack.c.bf16 %v970, %v969
  %v1028 = vpack.c.bf16 %v972, %v971
  %v1029 = vpack.c.bf16 %v974, %v973
  %v1030 = vpack.c.bf16 %v976, %v975
  %v1031 = vpack.c.bf16 %v978, %v977
  %v1032 = vpack.c.bf16 %v980, %v979
  %v1033 = vpack.c.bf16 %v982, %v981
  %v1034 = vpack.c.bf16 %v984, %v983
  %v1035 = vpack.c.bf16 %v986, %v985
  %v1036 = vpack.c.bf16 %v988, %v987
  %v1037 = vpack.c.bf16 %v990, %v989
  %v1038 = vpack.c.bf16 %v992, %v991
  %v1039 = vpack.c.bf16 %v994, %v993
  %v1040 = vpack.c.bf16 %v996, %v995
  %v1041 = vpack.c.bf16 %v998, %v997
  %v1042 = vpack.c.bf16 %v1000, %v999
  %v1043 = vpack.c.bf16 %v1002, %v1001
  %v1044 = vpack.c.bf16 %v1004, %v1003
  %v1045 = vpack.c.bf16 %v1006, %v1005
  %v1046 = vpack.c.bf16 %v1008, %v1007
  %v1047 = vpack.c.bf16 %v1010, %v1009
  %v1048 = vpack.c.bf16 %v1012, %v1011
  %v1049 = vpack.c.bf16 %v1014, %v1013
  %v1050 = vpack.c.bf16 %v1016, %v1015
  %v1051 = vpack.c.bf16 %v1018, %v1017
  %v1052 = vpack.c.bf16 %v1020, %v1019
  %v1085 = vunpack.c.l.b16 %v1021
  %v1086 = vunpack.c.h.b16 %v1021
  %v1087 = vunpack.c.l.b16 %v1022
  %v1088 = vunpack.c.h.b16 %v1022
  %v1089 = vunpack.c.l.b16 %v1023
  %v1090 = vunpack.c.h.b16 %v1023
  %v1091 = vunpack.c.l.b16 %v1024
  %v1092 = vunpack.c.h.b16 %v1024
  %v1093 = vunpack.c.l.b16 %v1025
  %v1094 = vunpack.c.h.b16 %v1025
  %v1095 = vunpack.c.l.b16 %v1026
  %v1096 = vunpack.c.h.b16 %v1026
  %v1097 = vunpack.c.l.b16 %v1027
  %v1098 = vunpack.c.h.b16 %v1027
  %v1099 = vunpack.c.l.b16 %v1028
  %v1100 = vunpack.c.h.b16 %v1028
  %v1101 = vunpack.c.l.b16 %v1029
  %v1102 = vunpack.c.h.b16 %v1029
  %v1103 = vunpack.c.l.b16 %v1030
  %v1104 = vunpack.c.h.b16 %v1030
  %v1105 = vunpack.c.l.b16 %v1031
  %v1106 = vunpack.c.h.b16 %v1031
  %v1107 = vunpack.c.l.b16 %v1032
  %v1108 = vunpack.c.h.b16 %v1032
  %v1109 = vunpack.c.l.b16 %v1033
  %v1110 = vunpack.c.h.b16 %v1033
  %v1111 = vunpack.c.l.b16 %v1034
  %v1112 = vunpack.c.h.b16 %v1034
  %v1113 = vunpack.c.l.b16 %v1035
  %v1114 = vunpack.c.h.b16 %v1035
  %v1115 = vunpack.c.l.b16 %v1036
  %v1116 = vunpack.c.h.b16 %v1036
  %v1117 = vunpack.c.l.b16 %v1037
  %v1118 = vunpack.c.h.b16 %v1037
  %v1119 = vunpack.c.l.b16 %v1038
  %v1120 = vunpack.c.h.b16 %v1038
  %v1121 = vunpack.c.l.b16 %v1039
  %v1122 = vunpack.c.h.b16 %v1039
  %v1123 = vunpack.c.l.b16 %v1040
  %v1124 = vunpack.c.h.b16 %v1040
  %v1125 = vunpack.c.l.b16 %v1041
  %v1126 = vunpack.c.h.b16 %v1041
  %v1127 = vunpack.c.l.b16 %v1042
  %v1128 = vunpack.c.h.b16 %v1042
  %v1129 = vunpack.c.l.b16 %v1043
  %v1130 = vunpack.c.h.b16 %v1043
  %v1131 = vunpack.c.l.b16 %v1044
  %v1132 = vunpack.c.h.b16 %v1044
  %v1133 = vunpack.c.l.b16 %v1045
  %v1134 = vunpack.c.h.b16 %v1045
  %v1135 = vunpack.c.l.b16 %v1046
  %v1136 = vunpack.c.h.b16 %v1046
  %v1137 = vunpack.c.l.b16 %v1047
  %v1138 = vunpack.c.h.b16 %v1047
  %v1139 = vunpack.c.l.b16 %v1048
  %v1140 = vunpack.c.h.b16 %v1048
  %v1141 = vunpack.c.l.b16 %v1049
  %v1142 = vunpack.c.h.b16 %v1049
  %v1143 = vunpack.c.l.b16 %v1050
  %v1144 = vunpack.c.h.b16 %v1050
  %v1145 = vunpack.c.l.b16 %v1051
  %v1146 = vunpack.c.h.b16 %v1051
  %v1147 = vunpack.c.l.b16 %v1052
  %v1148 = vunpack.c.h.b16 %v1052
  %v1149 = vpack.c.b16 %v1085, %v1085
  %v1150 = vpack.c.b16 %v1086, %v1086
  %v1151 = vpack.c.b16 %v1087, %v1087
  %v1152 = vpack.c.b16 %v1088, %v1088
  %v1153 = vpack.c.b16 %v1089, %v1089
  %v1154 = vpack.c.b16 %v1090, %v1090
  %v1155 = vpack.c.b16 %v1091, %v1091
  %v1156 = vpack.c.b16 %v1092, %v1092
  %v1157 = vpack.c.b16 %v1093, %v1093
  %v1158 = vpack.c.b16 %v1094, %v1094
  %v1159 = vpack.c.b16 %v1095, %v1095
  %v1160 = vpack.c.b16 %v1096, %v1096
  %v1161 = vpack.c.b16 %v1097, %v1097
  %v1162 = vpack.c.b16 %v1098, %v1098
  %v1163 = vpack.c.b16 %v1099, %v1099
  %v1164 = vpack.c.b16 %v1100, %v1100
  %v1165 = vpack.c.b16 %v1101, %v1101
  %v1166 = vpack.c.b16 %v1102, %v1102
  %v1167 = vpack.c.b16 %v1103, %v1103
  %v1168 = vpack.c.b16 %v1104, %v1104
  %v1169 = vpack.c.b16 %v1105, %v1105
  %v1170 = vpack.c.b16 %v1106, %v1106
  %v1171 = vpack.c.b16 %v1107, %v1107
  %v1172 = vpack.c.b16 %v1108, %v1108
  %v1173 = vpack.c.b16 %v1109, %v1109
  %v1174 = vpack.c.b16 %v1110, %v1110
  %v1175 = vpack.c.b16 %v1111, %v1111
  %v1176 = vpack.c.b16 %v1112, %v1112
  %v1177 = vpack.c.b16 %v1113, %v1113
  %v1178 = vpack.c.b16 %v1114, %v1114
  %v1179 = vpack.c.b16 %v1115, %v1115
  %v1180 = vpack.c.b16 %v1116, %v1116
  %v1181 = vpack.c.b16 %v1117, %v1117
  %v1182 = vpack.c.b16 %v1118, %v1118
  %v1183 = vpack.c.b16 %v1119, %v1119
  %v1184 = vpack.c.b16 %v1120, %v1120
  %v1185 = vpack.c.b16 %v1121, %v1121
  %v1186 = vpack.c.b16 %v1122, %v1122
  %v1187 = vpack.c.b16 %v1123, %v1123
  %v1188 = vpack.c.b16 %v1124, %v1124
  %v1189 = vpack.c.b16 %v1125, %v1125
  %v1190 = vpack.c.b16 %v1126, %v1126
  %v1191 = vpack.c.b16 %v1127, %v1127
  %v1192 = vpack.c.b16 %v1128, %v1128
  %v1193 = vpack.c.b16 %v1129, %v1129
  %v1194 = vpack.c.b16 %v1130, %v1130
  %v1195 = vpack.c.b16 %v1131, %v1131
  %v1196 = vpack.c.b16 %v1132, %v1132
  %v1197 = vpack.c.b16 %v1133, %v1133
  %v1198 = vpack.c.b16 %v1134, %v1134
  %v1199 = vpack.c.b16 %v1135, %v1135
  %v1200 = vpack.c.b16 %v1136, %v1136
  %v1201 = vpack.c.b16 %v1137, %v1137
  %v1202 = vpack.c.b16 %v1138, %v1138
  %v1203 = vpack.c.b16 %v1139, %v1139
  %v1204 = vpack.c.b16 %v1140, %v1140
  %v1205 = vpack.c.b16 %v1141, %v1141
  %v1206 = vpack.c.b16 %v1142, %v1142
  %v1207 = vpack.c.b16 %v1143, %v1143
  %v1208 = vpack.c.b16 %v1144, %v1144
  %v1209 = vpack.c.b16 %v1145, %v1145
  %v1210 = vpack.c.b16 %v1146, %v1146
  %v1211 = vpack.c.b16 %v1147, %v1147
  %v1212 = vpack.c.b16 %v1148, %v1148
  %vm1277 = vcmask 125952
  %1278 = vst.msk [vmem:[%s3] sm:$0xf] %vm1277, %v1149
  %1279 = vst.msk [vmem:[%s3 + $0x4] sm:$0xf] %vm1277, %v1150
  %1280 = vst.msk [vmem:[%s3 + $0x10] sm:$0xf] %vm1277, %v1151
  %1281 = vst.msk [vmem:[%s3 + $0x14] sm:$0xf] %vm1277, %v1152
  %1282 = vst.msk [vmem:[%s3 + $0x20] sm:$0xf] %vm1277, %v1153
  %1283 = vst.msk [vmem:[%s3 + $0x24] sm:$0xf] %vm1277, %v1154
  %1284 = vst.msk [vmem:[%s3 + $0x30] sm:$0xf] %vm1277, %v1155
  %1285 = vst.msk [vmem:[%s3 + $0x34] sm:$0xf] %vm1277, %v1156
  %1286 = vst.msk [vmem:[%s3 + $0x40] sm:$0xf] %vm1277, %v1157
  %1287 = vst.msk [vmem:[%s3 + $0x44] sm:$0xf] %vm1277, %v1158
  %1288 = vst.msk [vmem:[%s3 + $0x50] sm:$0xf] %vm1277, %v1159
  %1289 = vst.msk [vmem:[%s3 + $0x54] sm:$0xf] %vm1277, %v1160
  %1290 = vst.msk [vmem:[%s3 + $0x60] sm:$0xf] %vm1277, %v1161
  %1291 = vst.msk [vmem:[%s3 + $0x64] sm:$0xf] %vm1277, %v1162
  %1292 = vst.msk [vmem:[%s3 + $0x70] sm:$0xf] %vm1277, %v1163
  %1293 = vst.msk [vmem:[%s3 + $0x74] sm:$0xf] %vm1277, %v1164
  %1294 = vst.msk [vmem:[%s3 + $0x80] sm:$0xf] %vm1277, %v1165
  %1295 = vst.msk [vmem:[%s3 + $0x84] sm:$0xf] %vm1277, %v1166
  %1296 = vst.msk [vmem:[%s3 + $0x90] sm:$0xf] %vm1277, %v1167
  %1297 = vst.msk [vmem:[%s3 + $0x94] sm:$0xf] %vm1277, %v1168
  %1298 = vst.msk [vmem:[%s3 + $0xa0] sm:$0xf] %vm1277, %v1169
  %1299 = vst.msk [vmem:[%s3 + $0xa4] sm:$0xf] %vm1277, %v1170
  %1300 = vst.msk [vmem:[%s3 + $0xb0] sm:$0xf] %vm1277, %v1171
  %1301 = vst.msk [vmem:[%s3 + $0xb4] sm:$0xf] %vm1277, %v1172
  %1302 = vst.msk [vmem:[%s3 + $0xc0] sm:$0xf] %vm1277, %v1173
  %1303 = vst.msk [vmem:[%s3 + $0xc4] sm:$0xf] %vm1277, %v1174
  %1304 = vst.msk [vmem:[%s3 + $0xd0] sm:$0xf] %vm1277, %v1175
  %1305 = vst.msk [vmem:[%s3 + $0xd4] sm:$0xf] %vm1277, %v1176
  %1306 = vst.msk [vmem:[%s3 + $0xe0] sm:$0xf] %vm1277, %v1177
  %1307 = vst.msk [vmem:[%s3 + $0xe4] sm:$0xf] %vm1277, %v1178
  %1308 = vst.msk [vmem:[%s3 + $0xf0] sm:$0xf] %vm1277, %v1179
  %1309 = vst.msk [vmem:[%s3 + $0xf4] sm:$0xf] %vm1277, %v1180
  %1310 = vst.msk [vmem:[%s3 + $0x100] sm:$0xf] %vm1277, %v1181
  %1311 = vst.msk [vmem:[%s3 + $0x104] sm:$0xf] %vm1277, %v1182
  %1312 = vst.msk [vmem:[%s3 + $0x110] sm:$0xf] %vm1277, %v1183
  %1313 = vst.msk [vmem:[%s3 + $0x114] sm:$0xf] %vm1277, %v1184
  %1314 = vst.msk [vmem:[%s3 + $0x120] sm:$0xf] %vm1277, %v1185
  %1315 = vst.msk [vmem:[%s3 + $0x124] sm:$0xf] %vm1277, %v1186
  %1316 = vst.msk [vmem:[%s3 + $0x130] sm:$0xf] %vm1277, %v1187
  %1317 = vst.msk [vmem:[%s3 + $0x134] sm:$0xf] %vm1277, %v1188
  %1318 = vst.msk [vmem:[%s3 + $0x140] sm:$0xf] %vm1277, %v1189
  %1319 = vst.msk [vmem:[%s3 + $0x144] sm:$0xf] %vm1277, %v1190
  %1320 = vst.msk [vmem:[%s3 + $0x150] sm:$0xf] %vm1277, %v1191
  %1321 = vst.msk [vmem:[%s3 + $0x154] sm:$0xf] %vm1277, %v1192
  %1322 = vst.msk [vmem:[%s3 + $0x160] sm:$0xf] %vm1277, %v1193
  %1323 = vst.msk [vmem:[%s3 + $0x164] sm:$0xf] %vm1277, %v1194
  %1324 = vst.msk [vmem:[%s3 + $0x170] sm:$0xf] %vm1277, %v1195
  %1325 = vst.msk [vmem:[%s3 + $0x174] sm:$0xf] %vm1277, %v1196
  %1326 = vst.msk [vmem:[%s3 + $0x180] sm:$0xf] %vm1277, %v1197
  %1327 = vst.msk [vmem:[%s3 + $0x184] sm:$0xf] %vm1277, %v1198
  %1328 = vst.msk [vmem:[%s3 + $0x190] sm:$0xf] %vm1277, %v1199
  %1329 = vst.msk [vmem:[%s3 + $0x194] sm:$0xf] %vm1277, %v1200
  %1330 = vst.msk [vmem:[%s3 + $0x1a0] sm:$0xf] %vm1277, %v1201
  %1331 = vst.msk [vmem:[%s3 + $0x1a4] sm:$0xf] %vm1277, %v1202
  %1332 = vst.msk [vmem:[%s3 + $0x1b0] sm:$0xf] %vm1277, %v1203
  %1333 = vst.msk [vmem:[%s3 + $0x1b4] sm:$0xf] %vm1277, %v1204
  %1334 = vst.msk [vmem:[%s3 + $0x1c0] sm:$0xf] %vm1277, %v1205
  %1335 = vst.msk [vmem:[%s3 + $0x1c4] sm:$0xf] %vm1277, %v1206
  %1336 = vst.msk [vmem:[%s3 + $0x1d0] sm:$0xf] %vm1277, %v1207
  %1337 = vst.msk [vmem:[%s3 + $0x1d4] sm:$0xf] %vm1277, %v1208
  %1338 = vst.msk [vmem:[%s3 + $0x1e0] sm:$0xf] %vm1277, %v1209
  %1339 = vst.msk [vmem:[%s3 + $0x1e4] sm:$0xf] %vm1277, %v1210
  %1340 = vst.msk [vmem:[%s3 + $0x1f0] sm:$0xf] %vm1277, %v1211
  %1341 = vst.msk [vmem:[%s3 + $0x1f4] sm:$0xf] %vm1277, %v1212
  %s1342 = scalar_lea.vmem %s1, 2
  %v1343 = vld [vmem:[%s1342] sm:$0x3]
  %v1345 = vsel %vm344, %v1343, 0
  %1347 = vmatprep.subr.bf16.mxu0 0
  %1348 = vmatpush1.bf16.msra.mxu0 %v1345
  %1349 = vmatprep.subr.bf16.mxu0 0
  %1350 = vmatpush1.bf16.msra.mxu0 0
  %1351 = vmatprep.subr.bf16.mxu0 0
  %1352 = vmatpush1.bf16.msra.mxu0 0
  %1353 = vmatprep.subr.bf16.mxu0 0
  %1354 = vmatpush1.bf16.msra.mxu0 0
  %1355 = vmatprep.subr.bf16.mxu0 0
  %1356 = vmatpush1.bf16.msra.mxu0 0
  %1357 = vmatprep.subr.bf16.mxu0 0
  %1358 = vmatpush1.bf16.msra.mxu0 0
  %1359 = vmatprep.subr.bf16.mxu0 0
  %1360 = vmatpush1.bf16.msra.mxu0 0
  %1361 = vmatprep.subr.bf16.mxu0 0
  %1362 = vmatpush1.bf16.msra.mxu0 0
  %1363 = vmatprep.subr.bf16.mxu0 0
  %1364 = vmatpush1.bf16.msra.mxu0 0
  %1365 = vmatprep.subr.bf16.mxu0 0
  %1366 = vmatpush1.bf16.msra.mxu0 0
  %1367 = vmatprep.subr.bf16.mxu0 0
  %1368 = vmatpush1.bf16.msra.mxu0 0
  %1369 = vmatprep.subr.bf16.mxu0 0
  %1370 = vmatpush1.bf16.msra.mxu0 0
  %1371 = vmatprep.subr.bf16.mxu0 0
  %1372 = vmatpush1.bf16.msra.mxu0 0
  %1373 = vmatprep.subr.bf16.mxu0 0
  %1374 = vmatpush1.bf16.msra.mxu0 0
  %1375 = vmatprep.subr.bf16.mxu0 0
  %1376 = vmatpush1.bf16.msra.mxu0 0
  %1377 = vmatprep.subr.bf16.mxu0 0
  %1378 = vmatpush1.bf16.msra.mxu0 0
  %1379 = vmatprep.mubr.bf16.mxu0 0
  %1380 = vmatmul.mubr.bf16.gmra.mrb[0].mxu0 %v249
  %v1381 = vpop.f32.mrb[0].mxu0
  %v1382 = vadd.f32 %v85, %v1381
  %v1383 = vpop.f32.mrb[0].mxu0
  %v1384 = vpop.f32.mrb[0].mxu0
  %v1385 = vadd.f32 %v85, %v1384
  %v1386 = vpop.f32.mrb[0].mxu0
  %1387 = vmatprep.mubr.bf16.mxu0 0
  %1388 = vmatmul.mubr.bf16.gmra.mrb[0].mxu0 %v252
  %v1389 = vpop.f32.mrb[0].mxu0
  %v1390 = vadd.f32 %v85, %v1389
  %v1391 = vpop.f32.mrb[0].mxu0
  %v1392 = vpop.f32.mrb[0].mxu0
  %v1393 = vadd.f32 %v85, %v1392
  %v1394 = vpop.f32.mrb[0].mxu0
  %1395 = vmatprep.mubr.bf16.mxu0 0
  %1396 = vmatmul.mubr.bf16.gmra.mrb[0].mxu0 %v255
  %v1397 = vpop.f32.mrb[0].mxu0
  %v1398 = vadd.f32 %v85, %v1397
  %v1399 = vpop.f32.mrb[0].mxu0
  %v1400 = vpop.f32.mrb[0].mxu0
  %v1401 = vadd.f32 %v85, %v1400
  %v1402 = vpop.f32.mrb[0].mxu0
  %1403 = vmatprep.mubr.bf16.mxu0 0
  %1404 = vmatmul.mubr.bf16.gmra.mrb[0].mxu0 %v258
  %v1405 = vpop.f32.mrb[0].mxu0
  %v1406 = vadd.f32 %v85, %v1405
  %v1407 = vpop.f32.mrb[0].mxu0
  %v1408 = vpop.f32.mrb[0].mxu0
  %v1409 = vadd.f32 %v85, %v1408
  %v1410 = vpop.f32.mrb[0].mxu0
  %1411 = vmatprep.mubr.bf16.mxu0 0
  %1412 = vmatmul.mubr.bf16.gmra.mrb[0].mxu0 %v261
  %v1413 = vpop.f32.mrb[0].mxu0
  %v1414 = vadd.f32 %v85, %v1413
  %v1415 = vpop.f32.mrb[0].mxu0
  %v1416 = vpop.f32.mrb[0].mxu0
  %v1417 = vadd.f32 %v85, %v1416
  %v1418 = vpop.f32.mrb[0].mxu0
  %1419 = vmatprep.mubr.bf16.mxu0 0
  %1420 = vmatmul.mubr.bf16.gmra.mrb[0].mxu0 %v264
  %v1421 = vpop.f32.mrb[0].mxu0
  %v1422 = vadd.f32 %v85, %v1421
  %v1423 = vpop.f32.mrb[0].mxu0
  %v1424 = vpop.f32.mrb[0].mxu0
  %v1425 = vadd.f32 %v85, %v1424
  %v1426 = vpop.f32.mrb[0].mxu0
  %1427 = vmatprep.mubr.bf16.mxu0 0
  %1428 = vmatmul.mubr.bf16.gmra.mrb[0].mxu0 %v267
  %v1429 = vpop.f32.mrb[0].mxu0
  %v1430 = vadd.f32 %v85, %v1429
  %v1431 = vpop.f32.mrb[0].mxu0
  %v1432 = vpop.f32.mrb[0].mxu0
  %v1433 = vadd.f32 %v85, %v1432
  %v1434 = vpop.f32.mrb[0].mxu0
  %1435 = vmatprep.mubr.bf16.mxu0 0
  %1436 = vmatmul.mubr.bf16.gmra.mrb[0].mxu0 %v270
  %v1437 = vpop.f32.mrb[0].mxu0
  %v1438 = vadd.f32 %v85, %v1437
  %v1439 = vpop.f32.mrb[0].mxu0
  %v1440 = vpop.f32.mrb[0].mxu0
  %v1441 = vadd.f32 %v85, %v1440
  %v1442 = vpop.f32.mrb[0].mxu0
  %1443 = vmatprep.mubr.bf16.mxu0 0
  %1444 = vmatmul.mubr.bf16.gmra.mrb[0].mxu0 %v273
  %v1445 = vpop.f32.mrb[0].mxu0
  %v1446 = vadd.f32 %v85, %v1445
  %v1447 = vpop.f32.mrb[0].mxu0
  %v1448 = vpop.f32.mrb[0].mxu0
  %v1449 = vadd.f32 %v85, %v1448
  %v1450 = vpop.f32.mrb[0].mxu0
  %1451 = vmatprep.mubr.bf16.mxu0 0
  %1452 = vmatmul.mubr.bf16.gmra.mrb[0].mxu0 %v276
  %v1453 = vpop.f32.mrb[0].mxu0
  %v1454 = vadd.f32 %v85, %v1453
  %v1455 = vpop.f32.mrb[0].mxu0
  %v1456 = vpop.f32.mrb[0].mxu0
  %v1457 = vadd.f32 %v85, %v1456
  %v1458 = vpop.f32.mrb[0].mxu0
  %1459 = vmatprep.mubr.bf16.mxu0 0
  %1460 = vmatmul.mubr.bf16.gmra.mrb[0].mxu0 %v279
  %v1461 = vpop.f32.mrb[0].mxu0
  %v1462 = vadd.f32 %v85, %v1461
  %v1463 = vpop.f32.mrb[0].mxu0
  %v1464 = vpop.f32.mrb[0].mxu0
  %v1465 = vadd.f32 %v85, %v1464
  %v1466 = vpop.f32.mrb[0].mxu0
  %1467 = vmatprep.mubr.bf16.mxu0 0
  %1468 = vmatmul.mubr.bf16.gmra.mrb[0].mxu0 %v282
  %v1469 = vpop.f32.mrb[0].mxu0
  %v1470 = vadd.f32 %v85, %v1469
  %v1471 = vpop.f32.mrb[0].mxu0
  %v1472 = vpop.f32.mrb[0].mxu0
  %v1473 = vadd.f32 %v85, %v1472
  %v1474 = vpop.f32.mrb[0].mxu0
  %1475 = vmatprep.mubr.bf16.mxu0 0
  %1476 = vmatmul.mubr.bf16.gmra.mrb[0].mxu0 %v285
  %v1477 = vpop.f32.mrb[0].mxu0
  %v1478 = vadd.f32 %v85, %v1477
  %v1479 = vpop.f32.mrb[0].mxu0
  %v1480 = vpop.f32.mrb[0].mxu0
  %v1481 = vadd.f32 %v85, %v1480
  %v1482 = vpop.f32.mrb[0].mxu0
  %1483 = vmatprep.mubr.bf16.mxu0 0
  %1484 = vmatmul.mubr.bf16.gmra.mrb[0].mxu0 %v288
  %v1485 = vpop.f32.mrb[0].mxu0
  %v1486 = vadd.f32 %v85, %v1485
  %v1487 = vpop.f32.mrb[0].mxu0
  %v1488 = vpop.f32.mrb[0].mxu0
  %v1489 = vadd.f32 %v85, %v1488
  %v1490 = vpop.f32.mrb[0].mxu0
  %1491 = vmatprep.mubr.bf16.mxu0 0
  %1492 = vmatmul.mubr.bf16.gmra.mrb[0].mxu0 %v291
  %v1493 = vpop.f32.mrb[0].mxu0
  %v1494 = vadd.f32 %v85, %v1493
  %v1495 = vpop.f32.mrb[0].mxu0
  %v1496 = vpop.f32.mrb[0].mxu0
  %v1497 = vadd.f32 %v85, %v1496
  %v1498 = vpop.f32.mrb[0].mxu0
  %1499 = vmatprep.mubr.bf16.mxu0 0
  %1500 = vmatmul.mubr.bf16.gmra.mrb[0].mxu0 %v294
  %v1501 = vpop.f32.mrb[0].mxu0
  %v1502 = vadd.f32 %v85, %v1501
  %v1503 = vpop.f32.mrb[0].mxu0
  %v1504 = vpop.f32.mrb[0].mxu0
  %v1505 = vadd.f32 %v85, %v1504
  %v1506 = vpop.f32.mrb[0].mxu0
  %1507 = vmatprep.mubr.bf16.mxu0 0
  %1508 = vmatmul.mubr.bf16.gmra.mrb[0].mxu0 %v297
  %v1509 = vpop.f32.mrb[0].mxu0
  %v1510 = vadd.f32 %v85, %v1509
  %v1511 = vpop.f32.mrb[0].mxu0
  %v1512 = vpop.f32.mrb[0].mxu0
  %v1513 = vadd.f32 %v85, %v1512
  %v1514 = vpop.f32.mrb[0].mxu0
  %1515 = vmatprep.mubr.bf16.mxu0 0
  %1516 = vmatmul.mubr.bf16.gmra.mrb[0].mxu0 %v300
  %v1517 = vpop.f32.mrb[0].mxu0
  %v1518 = vadd.f32 %v85, %v1517
  %v1519 = vpop.f32.mrb[0].mxu0
  %v1520 = vpop.f32.mrb[0].mxu0
  %v1521 = vadd.f32 %v85, %v1520
  %v1522 = vpop.f32.mrb[0].mxu0
  %1523 = vmatprep.mubr.bf16.mxu0 0
  %1524 = vmatmul.mubr.bf16.gmra.mrb[0].mxu0 %v303
  %v1525 = vpop.f32.mrb[0].mxu0
  %v1526 = vadd.f32 %v85, %v1525
  %v1527 = vpop.f32.mrb[0].mxu0
  %v1528 = vpop.f32.mrb[0].mxu0
  %v1529 = vadd.f32 %v85, %v1528
  %v1530 = vpop.f32.mrb[0].mxu0
  %1531 = vmatprep.mubr.bf16.mxu0 0
  %1532 = vmatmul.mubr.bf16.gmra.mrb[0].mxu0 %v306
  %v1533 = vpop.f32.mrb[0].mxu0
  %v1534 = vadd.f32 %v85, %v1533
  %v1535 = vpop.f32.mrb[0].mxu0
  %v1536 = vpop.f32.mrb[0].mxu0
  %v1537 = vadd.f32 %v85, %v1536
  %v1538 = vpop.f32.mrb[0].mxu0
  %1539 = vmatprep.mubr.bf16.mxu0 0
  %1540 = vmatmul.mubr.bf16.gmra.mrb[0].mxu0 %v309
  %v1541 = vpop.f32.mrb[0].mxu0
  %v1542 = vadd.f32 %v85, %v1541
  %v1543 = vpop.f32.mrb[0].mxu0
  %v1544 = vpop.f32.mrb[0].mxu0
  %v1545 = vadd.f32 %v85, %v1544
  %v1546 = vpop.f32.mrb[0].mxu0
  %1547 = vmatprep.mubr.bf16.mxu0 0
  %1548 = vmatmul.mubr.bf16.gmra.mrb[0].mxu0 %v312
  %v1549 = vpop.f32.mrb[0].mxu0
  %v1550 = vadd.f32 %v85, %v1549
  %v1551 = vpop.f32.mrb[0].mxu0
  %v1552 = vpop.f32.mrb[0].mxu0
  %v1553 = vadd.f32 %v85, %v1552
  %v1554 = vpop.f32.mrb[0].mxu0
  %1555 = vmatprep.mubr.bf16.mxu0 0
  %1556 = vmatmul.mubr.bf16.gmra.mrb[0].mxu0 %v315
  %v1557 = vpop.f32.mrb[0].mxu0
  %v1558 = vadd.f32 %v85, %v1557
  %v1559 = vpop.f32.mrb[0].mxu0
  %v1560 = vpop.f32.mrb[0].mxu0
  %v1561 = vadd.f32 %v85, %v1560
  %v1562 = vpop.f32.mrb[0].mxu0
  %1563 = vmatprep.mubr.bf16.mxu0 0
  %1564 = vmatmul.mubr.bf16.gmra.mrb[0].mxu0 %v318
  %v1565 = vpop.f32.mrb[0].mxu0
  %v1566 = vadd.f32 %v85, %v1565
  %v1567 = vpop.f32.mrb[0].mxu0
  %v1568 = vpop.f32.mrb[0].mxu0
  %v1569 = vadd.f32 %v85, %v1568
  %v1570 = vpop.f32.mrb[0].mxu0
  %1571 = vmatprep.mubr.bf16.mxu0 0
  %1572 = vmatmul.mubr.bf16.gmra.mrb[0].mxu0 %v321
  %v1573 = vpop.f32.mrb[0].mxu0
  %v1574 = vadd.f32 %v85, %v1573
  %v1575 = vpop.f32.mrb[0].mxu0
  %v1576 = vpop.f32.mrb[0].mxu0
  %v1577 = vadd.f32 %v85, %v1576
  %v1578 = vpop.f32.mrb[0].mxu0
  %1579 = vmatprep.mubr.bf16.mxu0 0
  %1580 = vmatmul.mubr.bf16.gmra.mrb[0].mxu0 %v324
  %v1581 = vpop.f32.mrb[0].mxu0
  %v1582 = vadd.f32 %v85, %v1581
  %v1583 = vpop.f32.mrb[0].mxu0
  %v1584 = vpop.f32.mrb[0].mxu0
  %v1585 = vadd.f32 %v85, %v1584
  %v1586 = vpop.f32.mrb[0].mxu0
  %1587 = vmatprep.mubr.bf16.mxu0 0
  %1588 = vmatmul.mubr.bf16.gmra.mrb[0].mxu0 %v327
  %v1589 = vpop.f32.mrb[0].mxu0
  %v1590 = vadd.f32 %v85, %v1589
  %v1591 = vpop.f32.mrb[0].mxu0
  %v1592 = vpop.f32.mrb[0].mxu0
  %v1593 = vadd.f32 %v85, %v1592
  %v1594 = vpop.f32.mrb[0].mxu0
  %1595 = vmatprep.mubr.bf16.mxu0 0
  %1596 = vmatmul.mubr.bf16.gmra.mrb[0].mxu0 %v330
  %v1597 = vpop.f32.mrb[0].mxu0
  %v1598 = vadd.f32 %v85, %v1597
  %v1599 = vpop.f32.mrb[0].mxu0
  %v1600 = vpop.f32.mrb[0].mxu0
  %v1601 = vadd.f32 %v85, %v1600
  %v1602 = vpop.f32.mrb[0].mxu0
  %1603 = vmatprep.mubr.bf16.mxu0 0
  %1604 = vmatmul.mubr.bf16.gmra.mrb[0].mxu0 %v333
  %v1605 = vpop.f32.mrb[0].mxu0
  %v1606 = vadd.f32 %v85, %v1605
  %v1607 = vpop.f32.mrb[0].mxu0
  %v1608 = vpop.f32.mrb[0].mxu0
  %v1609 = vadd.f32 %v85, %v1608
  %v1610 = vpop.f32.mrb[0].mxu0
  %1611 = vmatprep.mubr.bf16.mxu0 0
  %1612 = vmatmul.mubr.bf16.gmra.mrb[0].mxu0 %v336
  %v1613 = vpop.f32.mrb[0].mxu0
  %v1614 = vadd.f32 %v85, %v1613
  %v1615 = vpop.f32.mrb[0].mxu0
  %v1616 = vpop.f32.mrb[0].mxu0
  %v1617 = vadd.f32 %v85, %v1616
  %v1618 = vpop.f32.mrb[0].mxu0
  %1619 = vmatprep.mubr.bf16.mxu0 0
  %1620 = vmatmul.mubr.bf16.gmra.mrb[0].mxu0 %v339
  %v1621 = vpop.f32.mrb[0].mxu0
  %v1622 = vadd.f32 %v85, %v1621
  %v1623 = vpop.f32.mrb[0].mxu0
  %v1624 = vpop.f32.mrb[0].mxu0
  %v1625 = vadd.f32 %v85, %v1624
  %v1626 = vpop.f32.mrb[0].mxu0
  %1627 = vmatprep.mubr.bf16.mxu0 0
  %1628 = vmatmul.mubr.bf16.gmra.mrb[0].mxu0 %v342
  %v1629 = vpop.f32.mrb[0].mxu0
  %v1630 = vadd.f32 %v85, %v1629
  %v1631 = vpop.f32.mrb[0].mxu0
  %v1632 = vpop.f32.mrb[0].mxu0
  %v1633 = vadd.f32 %v85, %v1632
  %v1634 = vpop.f32.mrb[0].mxu0
  %1635 = vdwg.mxu0
  %v1636 = vsub.f32 0.0, %v1382
  %v1637 = vsub.f32 0.0, %v1385
  %v1638 = vsub.f32 0.0, %v1390
  %v1639 = vsub.f32 0.0, %v1393
  %v1640 = vsub.f32 0.0, %v1398
  %v1641 = vsub.f32 0.0, %v1401
  %v1642 = vsub.f32 0.0, %v1406
  %v1643 = vsub.f32 0.0, %v1409
  %v1644 = vsub.f32 0.0, %v1414
  %v1645 = vsub.f32 0.0, %v1417
  %v1646 = vsub.f32 0.0, %v1422
  %v1647 = vsub.f32 0.0, %v1425
  %v1648 = vsub.f32 0.0, %v1430
  %v1649 = vsub.f32 0.0, %v1433
  %v1650 = vsub.f32 0.0, %v1438
  %v1651 = vsub.f32 0.0, %v1441
  %v1652 = vsub.f32 0.0, %v1446
  %v1653 = vsub.f32 0.0, %v1449
  %v1654 = vsub.f32 0.0, %v1454
  %v1655 = vsub.f32 0.0, %v1457
  %v1656 = vsub.f32 0.0, %v1462
  %v1657 = vsub.f32 0.0, %v1465
  %v1658 = vsub.f32 0.0, %v1470
  %v1659 = vsub.f32 0.0, %v1473
  %v1660 = vsub.f32 0.0, %v1478
  %v1661 = vsub.f32 0.0, %v1481
  %v1662 = vsub.f32 0.0, %v1486
  %v1663 = vsub.f32 0.0, %v1489
  %v1664 = vsub.f32 0.0, %v1494
  %v1665 = vsub.f32 0.0, %v1497
  %v1666 = vsub.f32 0.0, %v1502
  %v1667 = vsub.f32 0.0, %v1505
  %v1668 = vsub.f32 0.0, %v1510
  %v1669 = vsub.f32 0.0, %v1513
  %v1670 = vsub.f32 0.0, %v1518
  %v1671 = vsub.f32 0.0, %v1521
  %v1672 = vsub.f32 0.0, %v1526
  %v1673 = vsub.f32 0.0, %v1529
  %v1674 = vsub.f32 0.0, %v1534
  %v1675 = vsub.f32 0.0, %v1537
  %v1676 = vsub.f32 0.0, %v1542
  %v1677 = vsub.f32 0.0, %v1545
  %v1678 = vsub.f32 0.0, %v1550
  %v1679 = vsub.f32 0.0, %v1553
  %v1680 = vsub.f32 0.0, %v1558
  %v1681 = vsub.f32 0.0, %v1561
  %v1682 = vsub.f32 0.0, %v1566
  %v1683 = vsub.f32 0.0, %v1569
  %v1684 = vsub.f32 0.0, %v1574
  %v1685 = vsub.f32 0.0, %v1577
  %v1686 = vsub.f32 0.0, %v1582
  %v1687 = vsub.f32 0.0, %v1585
  %v1688 = vsub.f32 0.0, %v1590
  %v1689 = vsub.f32 0.0, %v1593
  %v1690 = vsub.f32 0.0, %v1598
  %v1691 = vsub.f32 0.0, %v1601
  %v1692 = vsub.f32 0.0, %v1606
  %v1693 = vsub.f32 0.0, %v1609
  %v1694 = vsub.f32 0.0, %v1614
  %v1695 = vsub.f32 0.0, %v1617
  %v1696 = vsub.f32 0.0, %v1622
  %v1697 = vsub.f32 0.0, %v1625
  %v1698 = vsub.f32 0.0, %v1630
  %v1699 = vsub.f32 0.0, %v1633
  %v1700 = vmul.f32 %v1636, 1.442695
  %v1701 = vpow.pop %v1700
  %v1702 = vmul.f32 %v1637, 1.442695
  %v1703 = vpow.pop %v1702
  %v1704 = vmul.f32 %v1638, 1.442695
  %v1705 = vpow.pop %v1704
  %v1706 = vmul.f32 %v1639, 1.442695
  %v1707 = vpow.pop %v1706
  %v1708 = vmul.f32 %v1640, 1.442695
  %v1709 = vpow.pop %v1708
  %v1710 = vmul.f32 %v1641, 1.442695
  %v1711 = vpow.pop %v1710
  %v1712 = vmul.f32 %v1642, 1.442695
  %v1713 = vpow.pop %v1712
  %v1714 = vmul.f32 %v1643, 1.442695
  %v1715 = vpow.pop %v1714
  %v1716 = vmul.f32 %v1644, 1.442695
  %v1717 = vpow.pop %v1716
  %v1718 = vmul.f32 %v1645, 1.442695
  %v1719 = vpow.pop %v1718
  %v1720 = vmul.f32 %v1646, 1.442695
  %v1721 = vpow.pop %v1720
  %v1722 = vmul.f32 %v1647, 1.442695
  %v1723 = vpow.pop %v1722
  %v1724 = vmul.f32 %v1648, 1.442695
  %v1725 = vpow.pop %v1724
  %v1726 = vmul.f32 %v1649, 1.442695
  %v1727 = vpow.pop %v1726
  %v1728 = vmul.f32 %v1650, 1.442695
  %v1729 = vpow.pop %v1728
  %v1730 = vmul.f32 %v1651, 1.442695
  %v1731 = vpow.pop %v1730
  %v1732 = vmul.f32 %v1652, 1.442695
  %v1733 = vpow.pop %v1732
  %v1734 = vmul.f32 %v1653, 1.442695
  %v1735 = vpow.pop %v1734
  %v1736 = vmul.f32 %v1654, 1.442695
  %v1737 = vpow.pop %v1736
  %v1738 = vmul.f32 %v1655, 1.442695
  %v1739 = vpow.pop %v1738
  %v1740 = vmul.f32 %v1656, 1.442695
  %v1741 = vpow.pop %v1740
  %v1742 = vmul.f32 %v1657, 1.442695
  %v1743 = vpow.pop %v1742
  %v1744 = vmul.f32 %v1658, 1.442695
  %v1745 = vpow.pop %v1744
  %v1746 = vmul.f32 %v1659, 1.442695
  %v1747 = vpow.pop %v1746
  %v1748 = vmul.f32 %v1660, 1.442695
  %v1749 = vpow.pop %v1748
  %v1750 = vmul.f32 %v1661, 1.442695
  %v1751 = vpow.pop %v1750
  %v1752 = vmul.f32 %v1662, 1.442695
  %v1753 = vpow.pop %v1752
  %v1754 = vmul.f32 %v1663, 1.442695
  %v1755 = vpow.pop %v1754
  %v1756 = vmul.f32 %v1664, 1.442695
  %v1757 = vpow.pop %v1756
  %v1758 = vmul.f32 %v1665, 1.442695
  %v1759 = vpow.pop %v1758
  %v1760 = vmul.f32 %v1666, 1.442695
  %v1761 = vpow.pop %v1760
  %v1762 = vmul.f32 %v1667, 1.442695
  %v1763 = vpow.pop %v1762
  %v1764 = vmul.f32 %v1668, 1.442695
  %v1765 = vpow.pop %v1764
  %v1766 = vmul.f32 %v1669, 1.442695
  %v1767 = vpow.pop %v1766
  %v1768 = vmul.f32 %v1670, 1.442695
  %v1769 = vpow.pop %v1768
  %v1770 = vmul.f32 %v1671, 1.442695
  %v1771 = vpow.pop %v1770
  %v1772 = vmul.f32 %v1672, 1.442695
  %v1773 = vpow.pop %v1772
  %v1774 = vmul.f32 %v1673, 1.442695
  %v1775 = vpow.pop %v1774
  %v1776 = vmul.f32 %v1674, 1.442695
  %v1777 = vpow.pop %v1776
  %v1778 = vmul.f32 %v1675, 1.442695
  %v1779 = vpow.pop %v1778
  %v1780 = vmul.f32 %v1676, 1.442695
  %v1781 = vpow.pop %v1780
  %v1782 = vmul.f32 %v1677, 1.442695
  %v1783 = vpow.pop %v1782
  %v1784 = vmul.f32 %v1678, 1.442695
  %v1785 = vpow.pop %v1784
  %v1786 = vmul.f32 %v1679, 1.442695
  %v1787 = vpow.pop %v1786
  %v1788 = vmul.f32 %v1680, 1.442695
  %v1789 = vpow.pop %v1788
  %v1790 = vmul.f32 %v1681, 1.442695
  %v1791 = vpow.pop %v1790
  %v1792 = vmul.f32 %v1682, 1.442695
  %v1793 = vpow.pop %v1792
  %v1794 = vmul.f32 %v1683, 1.442695
  %v1795 = vpow.pop %v1794
  %v1796 = vmul.f32 %v1684, 1.442695
  %v1797 = vpow.pop %v1796
  %v1798 = vmul.f32 %v1685, 1.442695
  %v1799 = vpow.pop %v1798
  %v1800 = vmul.f32 %v1686, 1.442695
  %v1801 = vpow.pop %v1800
  %v1802 = vmul.f32 %v1687, 1.442695
  %v1803 = vpow.pop %v1802
  %v1804 = vmul.f32 %v1688, 1.442695
  %v1805 = vpow.pop %v1804
  %v1806 = vmul.f32 %v1689, 1.442695
  %v1807 = vpow.pop %v1806
  %v1808 = vmul.f32 %v1690, 1.442695
  %v1809 = vpow.pop %v1808
  %v1810 = vmul.f32 %v1691, 1.442695
  %v1811 = vpow.pop %v1810
  %v1812 = vmul.f32 %v1692, 1.442695
  %v1813 = vpow.pop %v1812
  %v1814 = vmul.f32 %v1693, 1.442695
  %v1815 = vpow.pop %v1814
  %v1816 = vmul.f32 %v1694, 1.442695
  %v1817 = vpow.pop %v1816
  %v1818 = vmul.f32 %v1695, 1.442695
  %v1819 = vpow.pop %v1818
  %v1820 = vmul.f32 %v1696, 1.442695
  %v1821 = vpow.pop %v1820
  %v1822 = vmul.f32 %v1697, 1.442695
  %v1823 = vpow.pop %v1822
  %v1824 = vmul.f32 %v1698, 1.442695
  %v1825 = vpow.pop %v1824
  %v1826 = vmul.f32 %v1699, 1.442695
  %v1827 = vpow.pop %v1826
  %v1828 = vadd.f32 %v1701, 1.0
  %v1829 = vadd.f32 %v1703, 1.0
  %v1830 = vadd.f32 %v1705, 1.0
  %v1831 = vadd.f32 %v1707, 1.0
  %v1832 = vadd.f32 %v1709, 1.0
  %v1833 = vadd.f32 %v1711, 1.0
  %v1834 = vadd.f32 %v1713, 1.0
  %v1835 = vadd.f32 %v1715, 1.0
  %v1836 = vadd.f32 %v1717, 1.0
  %v1837 = vadd.f32 %v1719, 1.0
  %v1838 = vadd.f32 %v1721, 1.0
  %v1839 = vadd.f32 %v1723, 1.0
  %v1840 = vadd.f32 %v1725, 1.0
  %v1841 = vadd.f32 %v1727, 1.0
  %v1842 = vadd.f32 %v1729, 1.0
  %v1843 = vadd.f32 %v1731, 1.0
  %v1844 = vadd.f32 %v1733, 1.0
  %v1845 = vadd.f32 %v1735, 1.0
  %v1846 = vadd.f32 %v1737, 1.0
  %v1847 = vadd.f32 %v1739, 1.0
  %v1848 = vadd.f32 %v1741, 1.0
  %v1849 = vadd.f32 %v1743, 1.0
  %v1850 = vadd.f32 %v1745, 1.0
  %v1851 = vadd.f32 %v1747, 1.0
  %v1852 = vadd.f32 %v1749, 1.0
  %v1853 = vadd.f32 %v1751, 1.0
  %v1854 = vadd.f32 %v1753, 1.0
  %v1855 = vadd.f32 %v1755, 1.0
  %v1856 = vadd.f32 %v1757, 1.0
  %v1857 = vadd.f32 %v1759, 1.0
  %v1858 = vadd.f32 %v1761, 1.0
  %v1859 = vadd.f32 %v1763, 1.0
  %v1860 = vadd.f32 %v1765, 1.0
  %v1861 = vadd.f32 %v1767, 1.0
  %v1862 = vadd.f32 %v1769, 1.0
  %v1863 = vadd.f32 %v1771, 1.0
  %v1864 = vadd.f32 %v1773, 1.0
  %v1865 = vadd.f32 %v1775, 1.0
  %v1866 = vadd.f32 %v1777, 1.0
  %v1867 = vadd.f32 %v1779, 1.0
  %v1868 = vadd.f32 %v1781, 1.0
  %v1869 = vadd.f32 %v1783, 1.0
  %v1870 = vadd.f32 %v1785, 1.0
  %v1871 = vadd.f32 %v1787, 1.0
  %v1872 = vadd.f32 %v1789, 1.0
  %v1873 = vadd.f32 %v1791, 1.0
  %v1874 = vadd.f32 %v1793, 1.0
  %v1875 = vadd.f32 %v1795, 1.0
  %v1876 = vadd.f32 %v1797, 1.0
  %v1877 = vadd.f32 %v1799, 1.0
  %v1878 = vadd.f32 %v1801, 1.0
  %v1879 = vadd.f32 %v1803, 1.0
  %v1880 = vadd.f32 %v1805, 1.0
  %v1881 = vadd.f32 %v1807, 1.0
  %v1882 = vadd.f32 %v1809, 1.0
  %v1883 = vadd.f32 %v1811, 1.0
  %v1884 = vadd.f32 %v1813, 1.0
  %v1885 = vadd.f32 %v1815, 1.0
  %v1886 = vadd.f32 %v1817, 1.0
  %v1887 = vadd.f32 %v1819, 1.0
  %v1888 = vadd.f32 %v1821, 1.0
  %v1889 = vadd.f32 %v1823, 1.0
  %v1890 = vadd.f32 %v1825, 1.0
  %v1891 = vadd.f32 %v1827, 1.0
  %v1892 = vrcp.pop %v1828
  %v1893 = vrcp.pop %v1829
  %v1894 = vrcp.pop %v1830
  %v1895 = vrcp.pop %v1831
  %v1896 = vrcp.pop %v1832
  %v1897 = vrcp.pop %v1833
  %v1898 = vrcp.pop %v1834
  %v1899 = vrcp.pop %v1835
  %v1900 = vrcp.pop %v1836
  %v1901 = vrcp.pop %v1837
  %v1902 = vrcp.pop %v1838
  %v1903 = vrcp.pop %v1839
  %v1904 = vrcp.pop %v1840
  %v1905 = vrcp.pop %v1841
  %v1906 = vrcp.pop %v1842
  %v1907 = vrcp.pop %v1843
  %v1908 = vrcp.pop %v1844
  %v1909 = vrcp.pop %v1845
  %v1910 = vrcp.pop %v1846
  %v1911 = vrcp.pop %v1847
  %v1912 = vrcp.pop %v1848
  %v1913 = vrcp.pop %v1849
  %v1914 = vrcp.pop %v1850
  %v1915 = vrcp.pop %v1851
  %v1916 = vrcp.pop %v1852
  %v1917 = vrcp.pop %v1853
  %v1918 = vrcp.pop %v1854
  %v1919 = vrcp.pop %v1855
  %v1920 = vrcp.pop %v1856
  %v1921 = vrcp.pop %v1857
  %v1922 = vrcp.pop %v1858
  %v1923 = vrcp.pop %v1859
  %v1924 = vrcp.pop %v1860
  %v1925 = vrcp.pop %v1861
  %v1926 = vrcp.pop %v1862
  %v1927 = vrcp.pop %v1863
  %v1928 = vrcp.pop %v1864
  %v1929 = vrcp.pop %v1865
  %v1930 = vrcp.pop %v1866
  %v1931 = vrcp.pop %v1867
  %v1932 = vrcp.pop %v1868
  %v1933 = vrcp.pop %v1869
  %v1934 = vrcp.pop %v1870
  %v1935 = vrcp.pop %v1871
  %v1936 = vrcp.pop %v1872
  %v1937 = vrcp.pop %v1873
  %v1938 = vrcp.pop %v1874
  %v1939 = vrcp.pop %v1875
  %v1940 = vrcp.pop %v1876
  %v1941 = vrcp.pop %v1877
  %v1942 = vrcp.pop %v1878
  %v1943 = vrcp.pop %v1879
  %v1944 = vrcp.pop %v1880
  %v1945 = vrcp.pop %v1881
  %v1946 = vrcp.pop %v1882
  %v1947 = vrcp.pop %v1883
  %v1948 = vrcp.pop %v1884
  %v1949 = vrcp.pop %v1885
  %v1950 = vrcp.pop %v1886
  %v1951 = vrcp.pop %v1887
  %v1952 = vrcp.pop %v1888
  %v1953 = vrcp.pop %v1889
  %v1954 = vrcp.pop %v1890
  %v1955 = vrcp.pop %v1891
  %v1956 = vmul.f32 %v1382, %v1892
  %v1957 = vmul.f32 %v1385, %v1893
  %v1958 = vmul.f32 %v1390, %v1894
  %v1959 = vmul.f32 %v1393, %v1895
  %v1960 = vmul.f32 %v1398, %v1896
  %v1961 = vmul.f32 %v1401, %v1897
  %v1962 = vmul.f32 %v1406, %v1898
  %v1963 = vmul.f32 %v1409, %v1899
  %v1964 = vmul.f32 %v1414, %v1900
  %v1965 = vmul.f32 %v1417, %v1901
  %v1966 = vmul.f32 %v1422, %v1902
  %v1967 = vmul.f32 %v1425, %v1903
  %v1968 = vmul.f32 %v1430, %v1904
  %v1969 = vmul.f32 %v1433, %v1905
  %v1970 = vmul.f32 %v1438, %v1906
  %v1971 = vmul.f32 %v1441, %v1907
  %v1972 = vmul.f32 %v1446, %v1908
  %v1973 = vmul.f32 %v1449, %v1909
  %v1974 = vmul.f32 %v1454, %v1910
  %v1975 = vmul.f32 %v1457, %v1911
  %v1976 = vmul.f32 %v1462, %v1912
  %v1977 = vmul.f32 %v1465, %v1913
  %v1978 = vmul.f32 %v1470, %v1914
  %v1979 = vmul.f32 %v1473, %v1915
  %v1980 = vmul.f32 %v1478, %v1916
  %v1981 = vmul.f32 %v1481, %v1917
  %v1982 = vmul.f32 %v1486, %v1918
  %v1983 = vmul.f32 %v1489, %v1919
  %v1984 = vmul.f32 %v1494, %v1920
  %v1985 = vmul.f32 %v1497, %v1921
  %v1986 = vmul.f32 %v1502, %v1922
  %v1987 = vmul.f32 %v1505, %v1923
  %v1988 = vmul.f32 %v1510, %v1924
  %v1989 = vmul.f32 %v1513, %v1925
  %v1990 = vmul.f32 %v1518, %v1926
  %v1991 = vmul.f32 %v1521, %v1927
  %v1992 = vmul.f32 %v1526, %v1928
  %v1993 = vmul.f32 %v1529, %v1929
  %v1994 = vmul.f32 %v1534, %v1930
  %v1995 = vmul.f32 %v1537, %v1931
  %v1996 = vmul.f32 %v1542, %v1932
  %v1997 = vmul.f32 %v1545, %v1933
  %v1998 = vmul.f32 %v1550, %v1934
  %v1999 = vmul.f32 %v1553, %v1935
  %v2000 = vmul.f32 %v1558, %v1936
  %v2001 = vmul.f32 %v1561, %v1937
  %v2002 = vmul.f32 %v1566, %v1938
  %v2003 = vmul.f32 %v1569, %v1939
  %v2004 = vmul.f32 %v1574, %v1940
  %v2005 = vmul.f32 %v1577, %v1941
  %v2006 = vmul.f32 %v1582, %v1942
  %v2007 = vmul.f32 %v1585, %v1943
  %v2008 = vmul.f32 %v1590, %v1944
  %v2009 = vmul.f32 %v1593, %v1945
  %v2010 = vmul.f32 %v1598, %v1946
  %v2011 = vmul.f32 %v1601, %v1947
  %v2012 = vmul.f32 %v1606, %v1948
  %v2013 = vmul.f32 %v1609, %v1949
  %v2014 = vmul.f32 %v1614, %v1950
  %v2015 = vmul.f32 %v1617, %v1951
  %v2016 = vmul.f32 %v1622, %v1952
  %v2017 = vmul.f32 %v1625, %v1953
  %v2018 = vmul.f32 %v1630, %v1954
  %v2019 = vmul.f32 %v1633, %v1955
  %v2020 = vpack.c.bf16 %v1957, %v1956
  %v2021 = vpack.c.bf16 %v1959, %v1958
  %v2022 = vpack.c.bf16 %v1961, %v1960
  %v2023 = vpack.c.bf16 %v1963, %v1962
  %v2024 = vpack.c.bf16 %v1965, %v1964
  %v2025 = vpack.c.bf16 %v1967, %v1966
  %v2026 = vpack.c.bf16 %v1969, %v1968
  %v2027 = vpack.c.bf16 %v1971, %v1970
  %v2028 = vpack.c.bf16 %v1973, %v1972
  %v2029 = vpack.c.bf16 %v1975, %v1974
  %v2030 = vpack.c.bf16 %v1977, %v1976
  %v2031 = vpack.c.bf16 %v1979, %v1978
  %v2032 = vpack.c.bf16 %v1981, %v1980
  %v2033 = vpack.c.bf16 %v1983, %v1982
  %v2034 = vpack.c.bf16 %v1985, %v1984
  %v2035 = vpack.c.bf16 %v1987, %v1986
  %v2036 = vpack.c.bf16 %v1989, %v1988
  %v2037 = vpack.c.bf16 %v1991, %v1990
  %v2038 = vpack.c.bf16 %v1993, %v1992
  %v2039 = vpack.c.bf16 %v1995, %v1994
  %v2040 = vpack.c.bf16 %v1997, %v1996
  %v2041 = vpack.c.bf16 %v1999, %v1998
  %v2042 = vpack.c.bf16 %v2001, %v2000
  %v2043 = vpack.c.bf16 %v2003, %v2002
  %v2044 = vpack.c.bf16 %v2005, %v2004
  %v2045 = vpack.c.bf16 %v2007, %v2006
  %v2046 = vpack.c.bf16 %v2009, %v2008
  %v2047 = vpack.c.bf16 %v2011, %v2010
  %v2048 = vpack.c.bf16 %v2013, %v2012
  %v2049 = vpack.c.bf16 %v2015, %v2014
  %v2050 = vpack.c.bf16 %v2017, %v2016
  %v2051 = vpack.c.bf16 %v2019, %v2018
  %v2084 = vunpack.c.l.b16 %v2020
  %v2085 = vunpack.c.h.b16 %v2020
  %v2086 = vunpack.c.l.b16 %v2021
  %v2087 = vunpack.c.h.b16 %v2021
  %v2088 = vunpack.c.l.b16 %v2022
  %v2089 = vunpack.c.h.b16 %v2022
  %v2090 = vunpack.c.l.b16 %v2023
  %v2091 = vunpack.c.h.b16 %v2023
  %v2092 = vunpack.c.l.b16 %v2024
  %v2093 = vunpack.c.h.b16 %v2024
  %v2094 = vunpack.c.l.b16 %v2025
  %v2095 = vunpack.c.h.b16 %v2025
  %v2096 = vunpack.c.l.b16 %v2026
  %v2097 = vunpack.c.h.b16 %v2026
  %v2098 = vunpack.c.l.b16 %v2027
  %v2099 = vunpack.c.h.b16 %v2027
  %v2100 = vunpack.c.l.b16 %v2028
  %v2101 = vunpack.c.h.b16 %v2028
  %v2102 = vunpack.c.l.b16 %v2029
  %v2103 = vunpack.c.h.b16 %v2029
  %v2104 = vunpack.c.l.b16 %v2030
  %v2105 = vunpack.c.h.b16 %v2030
  %v2106 = vunpack.c.l.b16 %v2031
  %v2107 = vunpack.c.h.b16 %v2031
  %v2108 = vunpack.c.l.b16 %v2032
  %v2109 = vunpack.c.h.b16 %v2032
  %v2110 = vunpack.c.l.b16 %v2033
  %v2111 = vunpack.c.h.b16 %v2033
  %v2112 = vunpack.c.l.b16 %v2034
  %v2113 = vunpack.c.h.b16 %v2034
  %v2114 = vunpack.c.l.b16 %v2035
  %v2115 = vunpack.c.h.b16 %v2035
  %v2116 = vunpack.c.l.b16 %v2036
  %v2117 = vunpack.c.h.b16 %v2036
  %v2118 = vunpack.c.l.b16 %v2037
  %v2119 = vunpack.c.h.b16 %v2037
  %v2120 = vunpack.c.l.b16 %v2038
  %v2121 = vunpack.c.h.b16 %v2038
  %v2122 = vunpack.c.l.b16 %v2039
  %v2123 = vunpack.c.h.b16 %v2039
  %v2124 = vunpack.c.l.b16 %v2040
  %v2125 = vunpack.c.h.b16 %v2040
  %v2126 = vunpack.c.l.b16 %v2041
  %v2127 = vunpack.c.h.b16 %v2041
  %v2128 = vunpack.c.l.b16 %v2042
  %v2129 = vunpack.c.h.b16 %v2042
  %v2130 = vunpack.c.l.b16 %v2043
  %v2131 = vunpack.c.h.b16 %v2043
  %v2132 = vunpack.c.l.b16 %v2044
  %v2133 = vunpack.c.h.b16 %v2044
  %v2134 = vunpack.c.l.b16 %v2045
  %v2135 = vunpack.c.h.b16 %v2045
  %v2136 = vunpack.c.l.b16 %v2046
  %v2137 = vunpack.c.h.b16 %v2046
  %v2138 = vunpack.c.l.b16 %v2047
  %v2139 = vunpack.c.h.b16 %v2047
  %v2140 = vunpack.c.l.b16 %v2048
  %v2141 = vunpack.c.h.b16 %v2048
  %v2142 = vunpack.c.l.b16 %v2049
  %v2143 = vunpack.c.h.b16 %v2049
  %v2144 = vunpack.c.l.b16 %v2050
  %v2145 = vunpack.c.h.b16 %v2050
  %v2146 = vunpack.c.l.b16 %v2051
  %v2147 = vunpack.c.h.b16 %v2051
  %v2148 = vpack.c.b16 %v2084, %v2084
  %v2149 = vpack.c.b16 %v2085, %v2085
  %v2150 = vpack.c.b16 %v2086, %v2086
  %v2151 = vpack.c.b16 %v2087, %v2087
  %v2152 = vpack.c.b16 %v2088, %v2088
  %v2153 = vpack.c.b16 %v2089, %v2089
  %v2154 = vpack.c.b16 %v2090, %v2090
  %v2155 = vpack.c.b16 %v2091, %v2091
  %v2156 = vpack.c.b16 %v2092, %v2092
  %v2157 = vpack.c.b16 %v2093, %v2093
  %v2158 = vpack.c.b16 %v2094, %v2094
  %v2159 = vpack.c.b16 %v2095, %v2095
  %v2160 = vpack.c.b16 %v2096, %v2096
  %v2161 = vpack.c.b16 %v2097, %v2097
  %v2162 = vpack.c.b16 %v2098, %v2098
  %v2163 = vpack.c.b16 %v2099, %v2099
  %v2164 = vpack.c.b16 %v2100, %v2100
  %v2165 = vpack.c.b16 %v2101, %v2101
  %v2166 = vpack.c.b16 %v2102, %v2102
  %v2167 = vpack.c.b16 %v2103, %v2103
  %v2168 = vpack.c.b16 %v2104, %v2104
  %v2169 = vpack.c.b16 %v2105, %v2105
  %v2170 = vpack.c.b16 %v2106, %v2106
  %v2171 = vpack.c.b16 %v2107, %v2107
  %v2172 = vpack.c.b16 %v2108, %v2108
  %v2173 = vpack.c.b16 %v2109, %v2109
  %v2174 = vpack.c.b16 %v2110, %v2110
  %v2175 = vpack.c.b16 %v2111, %v2111
  %v2176 = vpack.c.b16 %v2112, %v2112
  %v2177 = vpack.c.b16 %v2113, %v2113
  %v2178 = vpack.c.b16 %v2114, %v2114
  %v2179 = vpack.c.b16 %v2115, %v2115
  %v2180 = vpack.c.b16 %v2116, %v2116
  %v2181 = vpack.c.b16 %v2117, %v2117
  %v2182 = vpack.c.b16 %v2118, %v2118
  %v2183 = vpack.c.b16 %v2119, %v2119
  %v2184 = vpack.c.b16 %v2120, %v2120
  %v2185 = vpack.c.b16 %v2121, %v2121
  %v2186 = vpack.c.b16 %v2122, %v2122
  %v2187 = vpack.c.b16 %v2123, %v2123
  %v2188 = vpack.c.b16 %v2124, %v2124
  %v2189 = vpack.c.b16 %v2125, %v2125
  %v2190 = vpack.c.b16 %v2126, %v2126
  %v2191 = vpack.c.b16 %v2127, %v2127
  %v2192 = vpack.c.b16 %v2128, %v2128
  %v2193 = vpack.c.b16 %v2129, %v2129
  %v2194 = vpack.c.b16 %v2130, %v2130
  %v2195 = vpack.c.b16 %v2131, %v2131
  %v2196 = vpack.c.b16 %v2132, %v2132
  %v2197 = vpack.c.b16 %v2133, %v2133
  %v2198 = vpack.c.b16 %v2134, %v2134
  %v2199 = vpack.c.b16 %v2135, %v2135
  %v2200 = vpack.c.b16 %v2136, %v2136
  %v2201 = vpack.c.b16 %v2137, %v2137
  %v2202 = vpack.c.b16 %v2138, %v2138
  %v2203 = vpack.c.b16 %v2139, %v2139
  %v2204 = vpack.c.b16 %v2140, %v2140
  %v2205 = vpack.c.b16 %v2141, %v2141
  %v2206 = vpack.c.b16 %v2142, %v2142
  %v2207 = vpack.c.b16 %v2143, %v2143
  %v2208 = vpack.c.b16 %v2144, %v2144
  %v2209 = vpack.c.b16 %v2145, %v2145
  %v2210 = vpack.c.b16 %v2146, %v2146
  %v2211 = vpack.c.b16 %v2147, %v2147
  %s2276 = scalar_lea.vmem %s3, 8
  %2277 = vst.msk [vmem:[%s2276] sm:$0xf] %vm1277, %v2148
  %2278 = vst.msk [vmem:[%s2276 + $0x4] sm:$0xf] %vm1277, %v2149
  %2279 = vst.msk [vmem:[%s2276 + $0x10] sm:$0xf] %vm1277, %v2150
  %2280 = vst.msk [vmem:[%s2276 + $0x14] sm:$0xf] %vm1277, %v2151
  %2281 = vst.msk [vmem:[%s2276 + $0x20] sm:$0xf] %vm1277, %v2152
  %2282 = vst.msk [vmem:[%s2276 + $0x24] sm:$0xf] %vm1277, %v2153
  %2283 = vst.msk [vmem:[%s2276 + $0x30] sm:$0xf] %vm1277, %v2154
  %2284 = vst.msk [vmem:[%s2276 + $0x34] sm:$0xf] %vm1277, %v2155
  %2285 = vst.msk [vmem:[%s2276 + $0x40] sm:$0xf] %vm1277, %v2156
  %2286 = vst.msk [vmem:[%s2276 + $0x44] sm:$0xf] %vm1277, %v2157
  %2287 = vst.msk [vmem:[%s2276 + $0x50] sm:$0xf] %vm1277, %v2158
  %2288 = vst.msk [vmem:[%s2276 + $0x54] sm:$0xf] %vm1277, %v2159
  %2289 = vst.msk [vmem:[%s2276 + $0x60] sm:$0xf] %vm1277, %v2160
  %2290 = vst.msk [vmem:[%s2276 + $0x64] sm:$0xf] %vm1277, %v2161
  %2291 = vst.msk [vmem:[%s2276 + $0x70] sm:$0xf] %vm1277, %v2162
  %2292 = vst.msk [vmem:[%s2276 + $0x74] sm:$0xf] %vm1277, %v2163
  %2293 = vst.msk [vmem:[%s2276 + $0x80] sm:$0xf] %vm1277, %v2164
  %2294 = vst.msk [vmem:[%s2276 + $0x84] sm:$0xf] %vm1277, %v2165
  %2295 = vst.msk [vmem:[%s2276 + $0x90] sm:$0xf] %vm1277, %v2166
  %2296 = vst.msk [vmem:[%s2276 + $0x94] sm:$0xf] %vm1277, %v2167
  %2297 = vst.msk [vmem:[%s2276 + $0xa0] sm:$0xf] %vm1277, %v2168
  %2298 = vst.msk [vmem:[%s2276 + $0xa4] sm:$0xf] %vm1277, %v2169
  %2299 = vst.msk [vmem:[%s2276 + $0xb0] sm:$0xf] %vm1277, %v2170
  %2300 = vst.msk [vmem:[%s2276 + $0xb4] sm:$0xf] %vm1277, %v2171
  %2301 = vst.msk [vmem:[%s2276 + $0xc0] sm:$0xf] %vm1277, %v2172
  %2302 = vst.msk [vmem:[%s2276 + $0xc4] sm:$0xf] %vm1277, %v2173
  %2303 = vst.msk [vmem:[%s2276 + $0xd0] sm:$0xf] %vm1277, %v2174
  %2304 = vst.msk [vmem:[%s2276 + $0xd4] sm:$0xf] %vm1277, %v2175
  %2305 = vst.msk [vmem:[%s2276 + $0xe0] sm:$0xf] %vm1277, %v2176
  %2306 = vst.msk [vmem:[%s2276 + $0xe4] sm:$0xf] %vm1277, %v2177
  %2307 = vst.msk [vmem:[%s2276 + $0xf0] sm:$0xf] %vm1277, %v2178
  %2308 = vst.msk [vmem:[%s2276 + $0xf4] sm:$0xf] %vm1277, %v2179
  %2309 = vst.msk [vmem:[%s2276 + $0x100] sm:$0xf] %vm1277, %v2180
  %2310 = vst.msk [vmem:[%s2276 + $0x104] sm:$0xf] %vm1277, %v2181
  %2311 = vst.msk [vmem:[%s2276 + $0x110] sm:$0xf] %vm1277, %v2182
  %2312 = vst.msk [vmem:[%s2276 + $0x114] sm:$0xf] %vm1277, %v2183
  %2313 = vst.msk [vmem:[%s2276 + $0x120] sm:$0xf] %vm1277, %v2184
  %2314 = vst.msk [vmem:[%s2276 + $0x124] sm:$0xf] %vm1277, %v2185
  %2315 = vst.msk [vmem:[%s2276 + $0x130] sm:$0xf] %vm1277, %v2186
  %2316 = vst.msk [vmem:[%s2276 + $0x134] sm:$0xf] %vm1277, %v2187
  %2317 = vst.msk [vmem:[%s2276 + $0x140] sm:$0xf] %vm1277, %v2188
  %2318 = vst.msk [vmem:[%s2276 + $0x144] sm:$0xf] %vm1277, %v2189
  %2319 = vst.msk [vmem:[%s2276 + $0x150] sm:$0xf] %vm1277, %v2190
  %2320 = vst.msk [vmem:[%s2276 + $0x154] sm:$0xf] %vm1277, %v2191
  %2321 = vst.msk [vmem:[%s2276 + $0x160] sm:$0xf] %vm1277, %v2192
  %2322 = vst.msk [vmem:[%s2276 + $0x164] sm:$0xf] %vm1277, %v2193
  %2323 = vst.msk [vmem:[%s2276 + $0x170] sm:$0xf] %vm1277, %v2194
  %2324 = vst.msk [vmem:[%s2276 + $0x174] sm:$0xf] %vm1277, %v2195
  %2325 = vst.msk [vmem:[%s2276 + $0x180] sm:$0xf] %vm1277, %v2196
  %2326 = vst.msk [vmem:[%s2276 + $0x184] sm:$0xf] %vm1277, %v2197
  %2327 = vst.msk [vmem:[%s2276 + $0x190] sm:$0xf] %vm1277, %v2198
  %2328 = vst.msk [vmem:[%s2276 + $0x194] sm:$0xf] %vm1277, %v2199
  %2329 = vst.msk [vmem:[%s2276 + $0x1a0] sm:$0xf] %vm1277, %v2200
  %2330 = vst.msk [vmem:[%s2276 + $0x1a4] sm:$0xf] %vm1277, %v2201
  %2331 = vst.msk [vmem:[%s2276 + $0x1b0] sm:$0xf] %vm1277, %v2202
  %2332 = vst.msk [vmem:[%s2276 + $0x1b4] sm:$0xf] %vm1277, %v2203
  %2333 = vst.msk [vmem:[%s2276 + $0x1c0] sm:$0xf] %vm1277, %v2204
  %2334 = vst.msk [vmem:[%s2276 + $0x1c4] sm:$0xf] %vm1277, %v2205
  %2335 = vst.msk [vmem:[%s2276 + $0x1d0] sm:$0xf] %vm1277, %v2206
  %2336 = vst.msk [vmem:[%s2276 + $0x1d4] sm:$0xf] %vm1277, %v2207
  %2337 = vst.msk [vmem:[%s2276 + $0x1e0] sm:$0xf] %vm1277, %v2208
  %2338 = vst.msk [vmem:[%s2276 + $0x1e4] sm:$0xf] %vm1277, %v2209
  %2339 = vst.msk [vmem:[%s2276 + $0x1f0] sm:$0xf] %vm1277, %v2210
  %2340 = vst.msk [vmem:[%s2276 + $0x1f4] sm:$0xf] %vm1277, %v2211
  // Predicated region
  $region14: #{_lambda_.1} parent=0 // pred_check
    _
  $region15: #{_lambda_.1} parent=0 // pred_check_branch
    %2342 = sbr.rel (0) target = $region17
  $region16: #{_lambda_.1} parent=0 // pred_region
    _
  $region17: #{_lambda_.1} parent=0 // pred_fallthru
    _
  // Predicated region
  $region18: #{_lambda_.1} parent=0 // pred_check
    _
  $region19: #{_lambda_.1} parent=0 // pred_check_branch
    %2344 = sbr.rel (0) target = $region21
  $region20: #{_lambda_.1} parent=0 // pred_region
    _
  $region21: #{_lambda_.1} parent=0 // pred_fallthru
    _

</llo_original>
